<compile_context>
chip_gen: v7x
topology: tpu7x:2x2x1
jax: 0.10.0
libtpu: 0.0.40
codegen_flags: <defaults>
</compile_context>

<pallas_src>
import functools

import jax
import jax.numpy as jnp
from jax import lax
from jax.experimental import pallas as pl
from jax.experimental.pallas import tpu as pltpu


def _inverted_residual_kernel(
        x_ref, w1_ref, b1_ref, wdw_ref, bdw_ref, w2_ref, b2_ref,   # inputs
        o_ref,                                                     # output
        hbuf,                                                      # scratch
        *, stride, has_expand, use_res, H, W, Ho, Wo, Hh, Wh, compute_dtype):
    s = stride
    f32 = jnp.float32
    hidden = hbuf.shape[-1]
    Hp = hbuf.shape[2]                       # = Ho + 2 // s
    Wp = hbuf.shape[3]                       # = Wo + 2 // s

    # ---- 1x1 expand conv + folded BN + ReLU6 -------------------------------
    # One MXU matmul per parity quadrant (a single matmul when stride == 1).
    # hbuf plane (qa, qb)[r, c, :] holds the activation of *padded* image
    # pixel (s*r + qa, s*c + qb), so the depthwise taps below are contiguous.
    if has_expand:
        w1 = w1_ref[...]                     # (Cin, hidden) compute_dtype
        b1 = b1_ref[...]                     # (1, hidden)   f32
    for qa in range(s):
        roff = 1 if qa == 0 else 0
        for qb in range(s):
            coff = 1 if qb == 0 else 0
            xq = x_ref[0, qa, qb]            # (Hh*Wh, Cin) f32
            if has_expand:
                hq = jnp.dot(xq.astype(compute_dtype), w1,
                             preferred_element_type=f32)
                hq = jnp.clip(hq + b1, 0.0, 6.0)
            else:                            # hidden == Cin, no expansion conv
                hq = xq.astype(f32)
            hbuf[qa, qb, roff:roff + Hh, coff:coff + Wh, :] = (
                hq.reshape(Hh, Wh, hidden).astype(hbuf.dtype))

    # ---- zero activations on the image's 1-pixel zero-padding border -------
    zrow = jnp.zeros((s, Wp, hidden), hbuf.dtype)
    zcol = jnp.zeros((s, Hp, hidden), hbuf.dtype)
    hbuf[0, :, 0, :, :] = zrow                                 # padded row 0
    hbuf[(H + 1) % s, :, (H + 1) // s, :, :] = zrow            # padded row H+1
    hbuf[:, 0, :, 0, :] = zcol                                 # padded col 0
    hbuf[:, (W + 1) % s, :, (W + 1) // s, :] = zcol            # padded col W+1

    # ---- 3x3 depthwise conv + folded BN + ReLU6 ----------------------------
    # 9 slab multiply-adds over the whole image; every tap is a contiguous
    # (Ho, Wo, hidden) read (also for stride 2, thanks to the parity planes).
    wdw = wdw_ref[...]                        # (3, 3, hidden) f32
    bdw = bdw_ref[...]                        # (1, hidden)    f32
    acc = None
    for di in range(3):
        for dj in range(3):
            tap = hbuf[di % s, dj % s,
                       di // s: di // s + Ho,
                       dj // s: dj // s + Wo, :].astype(f32)
            w_tap = wdw[di:di + 1, dj:dj + 1, :]        # (1, 1, hidden)
            term = tap * w_tap
            acc = term if acc is None else acc + term
    d = jnp.clip(acc + bdw, 0.0, 6.0)                   # (Ho, Wo, hidden) f32

    # ---- 1x1 projection conv + folded BN (one MXU matmul) + residual -------
    y = jnp.dot(d.reshape(Ho * Wo, hidden).astype(compute_dtype), w2_ref[...],
                preferred_element_type=f32)
    y = y + b2_ref[...]
    if use_res:                                         # stride==1, Cin==Cout
        y = y + x_ref[0, 0, 0].astype(f32)
    o_ref[0] = y.astype(o_ref.dtype)


def inverted_residual(x, params, *, stride, expand_ratio, in_planes, out_planes,
                      compute_dtype=jnp.bfloat16):
    """x: (N, H, W, in_planes) NHWC float32 -> (N, Ho, Wo, out_planes)."""
    N, H, W, Cin = x.shape
    assert Cin == in_planes and stride in (1, 2)
    hidden = int(round(in_planes * expand_ratio))
    has_expand = expand_ratio != 1
    if not has_expand:
        assert hidden == in_planes
    use_res = (stride == 1) and (in_planes == out_planes)
    s = stride
    Ho = (H - 1) // s + 1
    Wo = (W - 1) // s + 1
    Hh = -(-H // s)                           # quadrant height (== Ho)
    Wh = -(-W // s)                           # quadrant width  (== Wo)
    Hp = Ho + 2 // s                          # padded plane height
    Wp = Wo + 2 // s                          # padded plane width

    w1, b1, wdw, bdw, w2, b2 = params
    assert w1.shape == (in_planes, hidden) and w2.shape == (hidden, out_planes)
    w1c = w1.astype(compute_dtype)            # MXU operands in compute dtype,
    w2c = w2.astype(compute_dtype)            # accumulation stays f32.

    # Parity-quadrant view of the input: x_q[n, qa, qb, r*Wh + c, :] is image
    # pixel (s*r + qa - 1, s*c + qb - 1).  Stride 1: a pure metadata reshape
    # (no extra HBM pass).  Stride 2: one cheap XLA rearrangement that makes
    # every depthwise tap a contiguous slab inside the kernel.
    if s == 1:
        x_q = x.reshape(N, 1, 1, H * W, Cin)
    else:
        quads = []
        for qa in (0, 1):
            rows = x[:, 1 - qa::2, :, :]
            rows = jnp.pad(rows, ((0, 0), (0, Hh - rows.shape[1]),
                                  (0, 0), (0, 0)))
            for qb in (0, 1):
                q = rows[:, :, 1 - qb::2, :]
                q = jnp.pad(q, ((0, 0), (0, 0),
                                (0, Wh - q.shape[2]), (0, 0)))
                quads.append(q)
        x_q = jnp.stack(quads, axis=1).reshape(N, 2, 2, Hh * Wh, Cin)

    hbuf_dtype = compute_dtype                # bf16 halves the biggest scratch

    kernel = functools.partial(
        _inverted_residual_kernel, stride=s, has_expand=has_expand,
        use_res=use_res, H=H, W=W, Ho=Ho, Wo=Wo, Hh=Hh, Wh=Wh,
        compute_dtype=compute_dtype)

    # Explicit VMEM budget (lane/sublane padded), capped at 48 MiB so the same
    # sizing is also safe on v7x's 64 MiB physical VMEM per TensorCore.
    # TODO(synk): add H-row tiling (pipelined halo) for spatial extents where a
    # whole image does not fit this budget.
    def rup(v, m):
        return -(-v // m) * m
    cbytes = jnp.dtype(compute_dtype).itemsize
    est = (2 * s * s * rup(Hh * Wh, 8) * rup(Cin, 128) * x.dtype.itemsize
           + s * s * Hp * rup(Wp, 8) * rup(hidden, 128) * cbytes
           + 2 * rup(Ho * Wo, 8) * rup(out_planes, 128) * x.dtype.itemsize
           + (rup(Cin, 8) * rup(hidden, 128)
              + rup(hidden, 8) * rup(out_planes, 128)) * 2 * cbytes
           + (1 << 20))
    vmem_limit = int(min(max(4 * est, 32 << 20), 48 << 20))

    out_flat = pl.pallas_call(
        kernel,
        out_shape=jax.ShapeDtypeStruct((N, Ho * Wo, out_planes), x.dtype),
        grid_spec=pltpu.PrefetchScalarGridSpec(
            num_scalar_prefetch=0,
            grid=(N,),
            in_specs=[
                pl.BlockSpec((1, s, s, Hh * Wh, Cin),
                             lambda n: (n, 0, 0, 0, 0)),
                pl.BlockSpec(w1c.shape, lambda n: (0, 0)),
                pl.BlockSpec(b1.shape, lambda n: (0, 0)),
                pl.BlockSpec(wdw.shape, lambda n: (0, 0, 0)),
                pl.BlockSpec(bdw.shape, lambda n: (0, 0)),
                pl.BlockSpec(w2c.shape, lambda n: (0, 0)),
                pl.BlockSpec(b2.shape, lambda n: (0, 0)),
            ],
            out_specs=pl.BlockSpec((1, Ho * Wo, out_planes),
                                   lambda n: (n, 0, 0)),
            scratch_shapes=[pltpu.VMEM((s, s, Hp, Wp, hidden), hbuf_dtype)],
        ),
        compiler_params=pltpu.CompilerParams(
            dimension_semantics=("parallel",),
            vmem_limit_bytes=vmem_limit),
    )(x_q, w1c, b1, wdw, bdw, w2c, b2)

    return out_flat.reshape(N, Ho, Wo, out_planes)


def inverted_residual_ref(x, params, *, stride, expand_ratio, in_planes,
                          out_planes):
    """Pure-JAX reference (lax convs) for numerical verification."""
    w1, b1, wdw, bdw, w2, b2 = params
    hidden = int(round(in_planes * expand_ratio))
    dn = ('NHWC', 'HWIO', 'NHWC')
    h = x
    if expand_ratio != 1:
        h = lax.conv_general_dilated(x, w1.reshape(1, 1, in_planes, hidden),
                                     (1, 1), 'VALID', dimension_numbers=dn)
        h = jnp.clip(h + b1.reshape(1, 1, 1, hidden), 0.0, 6.0)
    h = lax.conv_general_dilated(h, wdw.reshape(3, 3, 1, hidden),
                                 (stride, stride), [(1, 1), (1, 1)],
                                 dimension_numbers=dn,
                                 feature_group_count=hidden)
    h = jnp.clip(h + bdw.reshape(1, 1, 1, hidden), 0.0, 6.0)
    y = lax.conv_general_dilated(h, w2.reshape(1, 1, hidden, out_planes),
                                 (1, 1), 'VALID', dimension_numbers=dn)
    y = y + b2.reshape(1, 1, 1, out_planes)
    if stride == 1 and in_planes == out_planes:
        y = y + x
    return y


def _make_params(key, in_planes, out_planes, expand_ratio, eps=1e-5):
    """Deterministic conv + BN params with BN folded into (weight, bias)."""
    hidden = int(round(in_planes * expand_ratio))
    ks = jax.random.split(key, 8)

    def bn(k, c):
        k1, k2, k3, k4 = jax.random.split(k, 4)
        gamma = jax.random.uniform(k1, (c,), minval=0.5, maxval=1.5)
        beta = jax.random.normal(k2, (c,)) * 0.1
        mean = jax.random.normal(k3, (c,)) * 0.1
        var = jax.random.uniform(k4, (c,), minval=0.5, maxval=1.5)
        return gamma, beta, mean, var

    def fold(w_oclast, bn_p):
        gamma, beta, mean, var = bn_p
        scale = gamma / jnp.sqrt(var + eps)
        return w_oclast * scale, beta - mean * scale

    # 1x1 expand: torch (hidden, in, 1, 1) -> matmul layout (in, hidden)
    w1, b1 = fold(jax.random.normal(ks[0], (in_planes, hidden)) * 0.1,
                  bn(ks[1], hidden))
    # depthwise 3x3: torch (hidden, 1, 3, 3) -> (3, 3, hidden)
    wdw, bdw = fold(jax.random.normal(ks[2], (3, 3, hidden)) * 0.1,
                    bn(ks[3], hidden))
    # 1x1 project: torch (out, hidden, 1, 1) -> (hidden, out)
    w2, b2 = fold(jax.random.normal(ks[4], (hidden, out_planes)) * 0.1,
                  bn(ks[5], out_planes))

    return (w1.astype(jnp.float32), b1.reshape(1, hidden).astype(jnp.float32),
            wdw.astype(jnp.float32), bdw.reshape(1, hidden).astype(jnp.float32),
            w2.astype(jnp.float32), b2.reshape(1, out_planes).astype(jnp.float32))


def _run_case(key, *, N, H, W, cin, cout, stride, t, compute_dtype, tol):
    kp, kx = jax.random.split(key)
    params = _make_params(kp, cin, cout, t)
    x = jax.random.normal(kx, (N, H, W, cin), dtype=jnp.float32)
    out = inverted_residual(x, params, stride=stride, expand_ratio=t,
                            in_planes=cin, out_planes=cout,
                            compute_dtype=compute_dtype)
    out = jax.block_until_ready(out)
    ref = inverted_residual_ref(x, params, stride=stride, expand_ratio=t,
                                in_planes=cin, out_planes=cout)
    assert out.shape == ref.shape, (out.shape, ref.shape)
    err = float(jnp.max(jnp.abs(out - ref)))
    assert err < tol, f"max abs err {err} (tol {tol})"
    return err


if __name__ == "__main__":
    key = jax.random.PRNGKey(0)
    ks = jax.random.split(key, 3)

    # stride=1, in==out -> residual path; f32 compute.
    _run_case(ks[0], N=2, H=16, W=16, cin=8, cout=8, stride=1, t=4,
              compute_dtype=jnp.float32, tol=3e-2)
    # same block with bf16 MXU operands / f32 accumulation (fast path).
    _run_case(ks[0], N=2, H=16, W=16, cin=8, cout=8, stride=1, t=4,
              compute_dtype=jnp.bfloat16, tol=2e-1)
    # stride=2 downsampling block (parity-plane depthwise, no residual), f32.
    _run_case(ks[1], N=2, H=16, W=16, cin=8, cout=16, stride=2, t=6,
              compute_dtype=jnp.float32, tol=3e-2)
    # expand_ratio=1 (no expansion conv), odd spatial size, stride=2, f32.
    _run_case(ks[2], N=1, H=15, W=15, cin=16, cout=16, stride=2, t=1,
              compute_dtype=jnp.float32, tol=3e-2)

    print("KERNEL_OK")
</pallas_src>

<mosaic_0001>
module attributes {stable_mosaic.version = 11 : i64} {
  func.func @_inverted_residual_kernel(%arg0: i32, %arg1: memref<1x1x1x256x8xf32, #tpu.memory_space<vmem>>, %arg2: memref<8x32xf32, #tpu.memory_space<vmem>>, %arg3: memref<1x32xf32, #tpu.memory_space<vmem>>, %arg4: memref<3x3x32xf32, #tpu.memory_space<vmem>>, %arg5: memref<1x32xf32, #tpu.memory_space<vmem>>, %arg6: memref<32x8xf32, #tpu.memory_space<vmem>>, %arg7: memref<1x8xf32, #tpu.memory_space<vmem>>, %arg8: memref<1x256x8xf32, #tpu.memory_space<vmem>>, %arg9: memref<1x1x18x18x32xf32, #tpu.memory_space<vmem>>) attributes {dimension_semantics = [#tpu.dimension_semantics<parallel>], iteration_bounds = array<i64: 2>, scalar_prefetch = 0 : i64, scratch_operands = 1 : i64, tpu.core_type = #tpu.core_type<tc>, window_params = [{transform_indices = @transform_0, window_bounds = array<i64: 1, 1, 1, 256, 8>}, {pipeline_mode = #tpu.pipeline_mode<synchronous>, transform_indices = @transform_1, window_bounds = array<i64: 8, 32>}, {pipeline_mode = #tpu.pipeline_mode<synchronous>, transform_indices = @transform_2, window_bounds = array<i64: 1, 32>}, {pipeline_mode = #tpu.pipeline_mode<synchronous>, transform_indices = @transform_3, window_bounds = array<i64: 3, 3, 32>}, {pipeline_mode = #tpu.pipeline_mode<synchronous>, transform_indices = @transform_4, window_bounds = array<i64: 1, 32>}, {pipeline_mode = #tpu.pipeline_mode<synchronous>, transform_indices = @transform_5, window_bounds = array<i64: 32, 8>}, {pipeline_mode = #tpu.pipeline_mode<synchronous>, transform_indices = @transform_6, window_bounds = array<i64: 1, 8>}, {transform_indices = @transform_7, window_bounds = array<i64: 1, 256, 8>}]} {
    %c0 = arith.constant 0 : index
    %c0_0 = arith.constant 0 : index
    %0 = vector.load %arg2[%c0, %c0_0] : memref<8x32xf32, #tpu.memory_space<vmem>>, vector<8x32xf32>
    %c0_1 = arith.constant 0 : index
    %c0_2 = arith.constant 0 : index
    %1 = vector.load %arg3[%c0_1, %c0_2] : memref<1x32xf32, #tpu.memory_space<vmem>>, vector<1x32xf32>
    %c0_3 = arith.constant 0 : index
    %c0_4 = arith.constant 0 : index
    %c0_5 = arith.constant 0 : index
    %c0_6 = arith.constant 0 : index
    %c0_7 = arith.constant 0 : index
    %2 = vector.load %arg1[%c0_3, %c0_4, %c0_5, %c0_6, %c0_7] : memref<1x1x1x256x8xf32, #tpu.memory_space<vmem>>, vector<1x1x1x256x8xf32>
    %3 = vector.shape_cast %2 : vector<1x1x1x256x8xf32> to vector<256x8xf32>
    %cst = arith.constant dense<0.000000e+00> : vector<256x32xf32>
    %4 = tpu.matmul %3, %0, %cst {dimension_numbers = #tpu.dot_dimension_numbers<[1], [0], [0], [1], [0, 0, 1, 1], [], []>} : vector<256x8xf32>, vector<8x32xf32>, vector<256x32xf32> -> vector<256x32xf32>
    %5 = vector.broadcast %1 : vector<1x32xf32> to vector<256x32xf32>
    %6 = arith.addf %4, %5 : vector<256x32xf32>
    %cst_8 = arith.constant 0.000000e+00 : f32
    %cst_9 = arith.constant 6.000000e+00 : f32
    %7 = vector.broadcast %cst_8 : f32 to vector<256x32xf32>
    %8 = arith.maximumf %7, %6 : vector<256x32xf32>
    %9 = vector.broadcast %cst_9 : f32 to vector<256x32xf32>
    %10 = arith.minimumf %9, %8 : vector<256x32xf32>
    %11 = vector.shape_cast %10 : vector<256x32xf32> to vector<16x16x32xf32>
    %c0_10 = arith.constant 0 : index
    %c0_11 = arith.constant 0 : index
    %c1 = arith.constant 1 : index
    %c1_12 = arith.constant 1 : index
    %c0_13 = arith.constant 0 : index
    %12 = vector.load %arg9[%c0_10, %c0_11, %c1, %c1_12, %c0_13] : memref<1x1x18x18x32xf32, #tpu.memory_space<vmem>>, vector<1x1x16x16x32xf32>
    %13 = vector.shape_cast %12 : vector<1x1x16x16x32xf32> to vector<16x16x32xf32>
    %14 = vector.shape_cast %11 : vector<16x16x32xf32> to vector<1x1x16x16x32xf32>
    tpu.vector_store %arg9[%c0_10, %c0_11, %c1, %c1_12, %c0_13], %14 {strides = array<i32>} : memref<1x1x18x18x32xf32, #tpu.memory_space<vmem>>, vector<1x1x16x16x32xf32>,
    %cst_14 = arith.constant 0.000000e+00 : f32
    %15 = vector.broadcast %cst_14 : f32 to vector<1x18x32xf32>
    %cst_15 = arith.constant 0.000000e+00 : f32
    %16 = vector.broadcast %cst_15 : f32 to vector<1x18x32xf32>
    %c0_16 = arith.constant 0 : index
    %c0_17 = arith.constant 0 : index
    %c0_18 = arith.constant 0 : index
    %c0_19 = arith.constant 0 : index
    %c0_20 = arith.constant 0 : index
    %17 = vector.load %arg9[%c0_16, %c0_17, %c0_18, %c0_19, %c0_20] : memref<1x1x18x18x32xf32, #tpu.memory_space<vmem>>, vector<1x1x1x18x32xf32>
    %18 = vector.shape_cast %17 : vector<1x1x1x18x32xf32> to vector<1x18x32xf32>
    %19 = vector.shape_cast %15 : vector<1x18x32xf32> to vector<1x1x1x18x32xf32>
    tpu.vector_store %arg9[%c0_16, %c0_17, %c0_18, %c0_19, %c0_20], %19 {strides = array<i32>} : memref<1x1x18x18x32xf32, #tpu.memory_space<vmem>>, vector<1x1x1x18x32xf32>,
    %c0_21 = arith.constant 0 : index
    %c0_22 = arith.constant 0 : index
    %c17 = arith.constant 17 : index
    %c0_23 = arith.constant 0 : index
    %c0_24 = arith.constant 0 : index
    %20 = vector.load %arg9[%c0_21, %c0_22, %c17, %c0_23, %c0_24] : memref<1x1x18x18x32xf32, #tpu.memory_space<vmem>>, vector<1x1x1x18x32xf32>
    %21 = vector.shape_cast %20 : vector<1x1x1x18x32xf32> to vector<1x18x32xf32>
    %22 = vector.shape_cast %15 : vector<1x18x32xf32> to vector<1x1x1x18x32xf32>
    tpu.vector_store %arg9[%c0_21, %c0_22, %c17, %c0_23, %c0_24], %22 {strides = array<i32>} : memref<1x1x18x18x32xf32, #tpu.memory_space<vmem>>, vector<1x1x1x18x32xf32>,
    %c0_25 = arith.constant 0 : index
    %c0_26 = arith.constant 0 : index
    %c0_27 = arith.constant 0 : index
    %c0_28 = arith.constant 0 : index
    %c0_29 = arith.constant 0 : index
    %23 = vector.load %arg9[%c0_25, %c0_26, %c0_27, %c0_28, %c0_29] : memref<1x1x18x18x32xf32, #tpu.memory_space<vmem>>, vector<1x1x18x1x32xf32>
    %24 = vector.shape_cast %23 : vector<1x1x18x1x32xf32> to vector<1x18x32xf32>
    %25 = vector.shape_cast %16 : vector<1x18x32xf32> to vector<1x1x18x1x32xf32>
    tpu.vector_store %arg9[%c0_25, %c0_26, %c0_27, %c0_28, %c0_29], %25 {strides = array<i32>} : memref<1x1x18x18x32xf32, #tpu.memory_space<vmem>>, vector<1x1x18x1x32xf32>,
    %c0_30 = arith.constant 0 : index
    %c0_31 = arith.constant 0 : index
    %c0_32 = arith.constant 0 : index
    %c17_33 = arith.constant 17 : index
    %c0_34 = arith.constant 0 : index
    %26 = vector.load %arg9[%c0_30, %c0_31, %c0_32, %c17_33, %c0_34] : memref<1x1x18x18x32xf32, #tpu.memory_space<vmem>>, vector<1x1x18x1x32xf32>
    %27 = vector.shape_cast %26 : vector<1x1x18x1x32xf32> to vector<1x18x32xf32>
    %28 = vector.shape_cast %16 : vector<1x18x32xf32> to vector<1x1x18x1x32xf32>
    tpu.vector_store %arg9[%c0_30, %c0_31, %c0_32, %c17_33, %c0_34], %28 {strides = array<i32>} : memref<1x1x18x18x32xf32, #tpu.memory_space<vmem>>, vector<1x1x18x1x32xf32>,
    %c0_35 = arith.constant 0 : index
    %c0_36 = arith.constant 0 : index
    %c0_37 = arith.constant 0 : index
    %29 = vector.load %arg4[%c0_35, %c0_36, %c0_37] : memref<3x3x32xf32, #tpu.memory_space<vmem>>, vector<3x3x32xf32>
    %c0_38 = arith.constant 0 : index
    %c0_39 = arith.constant 0 : index
    %30 = vector.load %arg5[%c0_38, %c0_39] : memref<1x32xf32, #tpu.memory_space<vmem>>, vector<1x32xf32>
    %c0_40 = arith.constant 0 : index
    %c0_41 = arith.constant 0 : index
    %c0_42 = arith.constant 0 : index
    %c0_43 = arith.constant 0 : index
    %c0_44 = arith.constant 0 : index
    %31 = vector.load %arg9[%c0_40, %c0_41, %c0_42, %c0_43, %c0_44] : memref<1x1x18x18x32xf32, #tpu.memory_space<vmem>>, vector<1x1x16x16x32xf32>
    %32 = vector.shape_cast %31 : vector<1x1x16x16x32xf32> to vector<16x16x32xf32>
    %33 = vector.extract_strided_slice %29 {offsets = [0, 0, 0], sizes = [1, 1, 32], strides = [1, 1, 1]} : vector<3x3x32xf32> to vector<1x1x32xf32>
    %34 = vector.broadcast %33 : vector<1x1x32xf32> to vector<16x16x32xf32>
    %35 = arith.mulf %32, %34 : vector<16x16x32xf32>
    %c0_45 = arith.constant 0 : index
    %c0_46 = arith.constant 0 : index
    %c0_47 = arith.constant 0 : index
    %c1_48 = arith.constant 1 : index
    %c0_49 = arith.constant 0 : index
    %36 = vector.load %arg9[%c0_45, %c0_46, %c0_47, %c1_48, %c0_49] : memref<1x1x18x18x32xf32, #tpu.memory_space<vmem>>, vector<1x1x16x16x32xf32>
    %37 = vector.shape_cast %36 : vector<1x1x16x16x32xf32> to vector<16x16x32xf32>
    %38 = vector.extract_strided_slice %29 {offsets = [0, 1, 0], sizes = [1, 1, 32], strides = [1, 1, 1]} : vector<3x3x32xf32> to vector<1x1x32xf32>
    %39 = vector.broadcast %38 : vector<1x1x32xf32> to vector<16x16x32xf32>
    %40 = arith.mulf %37, %39 : vector<16x16x32xf32>
    %41 = arith.addf %35, %40 : vector<16x16x32xf32>
    %c0_50 = arith.constant 0 : index
    %c0_51 = arith.constant 0 : index
    %c0_52 = arith.constant 0 : index
    %c2 = arith.constant 2 : index
    %c0_53 = arith.constant 0 : index
    %42 = vector.load %arg9[%c0_50, %c0_51, %c0_52, %c2, %c0_53] : memref<1x1x18x18x32xf32, #tpu.memory_space<vmem>>, vector<1x1x16x16x32xf32>
    %43 = vector.shape_cast %42 : vector<1x1x16x16x32xf32> to vector<16x16x32xf32>
    %44 = vector.extract_strided_slice %29 {offsets = [0, 2, 0], sizes = [1, 1, 32], strides = [1, 1, 1]} : vector<3x3x32xf32> to vector<1x1x32xf32>
    %45 = vector.broadcast %44 : vector<1x1x32xf32> to vector<16x16x32xf32>
    %46 = arith.mulf %43, %45 : vector<16x16x32xf32>
    %47 = arith.addf %41, %46 : vector<16x16x32xf32>
    %c0_54 = arith.constant 0 : index
    %c0_55 = arith.constant 0 : index
    %c1_56 = arith.constant 1 : index
    %c0_57 = arith.constant 0 : index
    %c0_58 = arith.constant 0 : index
    %48 = vector.load %arg9[%c0_54, %c0_55, %c1_56, %c0_57, %c0_58] : memref<1x1x18x18x32xf32, #tpu.memory_space<vmem>>, vector<1x1x16x16x32xf32>
    %49 = vector.shape_cast %48 : vector<1x1x16x16x32xf32> to vector<16x16x32xf32>
    %50 = vector.extract_strided_slice %29 {offsets = [1, 0, 0], sizes = [1, 1, 32], strides = [1, 1, 1]} : vector<3x3x32xf32> to vector<1x1x32xf32>
    %51 = vector.broadcast %50 : vector<1x1x32xf32> to vector<16x16x32xf32>
    %52 = arith.mulf %49, %51 : vector<16x16x32xf32>
    %53 = arith.addf %47, %52 : vector<16x16x32xf32>
    %c0_59 = arith.constant 0 : index
    %c0_60 = arith.constant 0 : index
    %c1_61 = arith.constant 1 : index
    %c1_62 = arith.constant 1 : index
    %c0_63 = arith.constant 0 : index
    %54 = vector.load %arg9[%c0_59, %c0_60, %c1_61, %c1_62, %c0_63] : memref<1x1x18x18x32xf32, #tpu.memory_space<vmem>>, vector<1x1x16x16x32xf32>
    %55 = vector.shape_cast %54 : vector<1x1x16x16x32xf32> to vector<16x16x32xf32>
    %56 = vector.extract_strided_slice %29 {offsets = [1, 1, 0], sizes = [1, 1, 32], strides = [1, 1, 1]} : vector<3x3x32xf32> to vector<1x1x32xf32>
    %57 = vector.broadcast %56 : vector<1x1x32xf32> to vector<16x16x32xf32>
    %58 = arith.mulf %55, %57 : vector<16x16x32xf32>
    %59 = arith.addf %53, %58 : vector<16x16x32xf32>
    %c0_64 = arith.constant 0 : index
    %c0_65 = arith.constant 0 : index
    %c1_66 = arith.constant 1 : index
    %c2_67 = arith.constant 2 : index
    %c0_68 = arith.constant 0 : index
    %60 = vector.load %arg9[%c0_64, %c0_65, %c1_66, %c2_67, %c0_68] : memref<1x1x18x18x32xf32, #tpu.memory_space<vmem>>, vector<1x1x16x16x32xf32>
    %61 = vector.shape_cast %60 : vector<1x1x16x16x32xf32> to vector<16x16x32xf32>
    %62 = vector.extract_strided_slice %29 {offsets = [1, 2, 0], sizes = [1, 1, 32], strides = [1, 1, 1]} : vector<3x3x32xf32> to vector<1x1x32xf32>
    %63 = vector.broadcast %62 : vector<1x1x32xf32> to vector<16x16x32xf32>
    %64 = arith.mulf %61, %63 : vector<16x16x32xf32>
    %65 = arith.addf %59, %64 : vector<16x16x32xf32>
    %c0_69 = arith.constant 0 : index
    %c0_70 = arith.constant 0 : index
    %c2_71 = arith.constant 2 : index
    %c0_72 = arith.constant 0 : index
    %c0_73 = arith.constant 0 : index
    %66 = vector.load %arg9[%c0_69, %c0_70, %c2_71, %c0_72, %c0_73] : memref<1x1x18x18x32xf32, #tpu.memory_space<vmem>>, vector<1x1x16x16x32xf32>
    %67 = vector.shape_cast %66 : vector<1x1x16x16x32xf32> to vector<16x16x32xf32>
    %68 = vector.extract_strided_slice %29 {offsets = [2, 0, 0], sizes = [1, 1, 32], strides = [1, 1, 1]} : vector<3x3x32xf32> to vector<1x1x32xf32>
    %69 = vector.broadcast %68 : vector<1x1x32xf32> to vector<16x16x32xf32>
    %70 = arith.mulf %67, %69 : vector<16x16x32xf32>
    %71 = arith.addf %65, %70 : vector<16x16x32xf32>
    %c0_74 = arith.constant 0 : index
    %c0_75 = arith.constant 0 : index
    %c2_76 = arith.constant 2 : index
    %c1_77 = arith.constant 1 : index
    %c0_78 = arith.constant 0 : index
    %72 = vector.load %arg9[%c0_74, %c0_75, %c2_76, %c1_77, %c0_78] : memref<1x1x18x18x32xf32, #tpu.memory_space<vmem>>, vector<1x1x16x16x32xf32>
    %73 = vector.shape_cast %72 : vector<1x1x16x16x32xf32> to vector<16x16x32xf32>
    %74 = vector.extract_strided_slice %29 {offsets = [2, 1, 0], sizes = [1, 1, 32], strides = [1, 1, 1]} : vector<3x3x32xf32> to vector<1x1x32xf32>
    %75 = vector.broadcast %74 : vector<1x1x32xf32> to vector<16x16x32xf32>
    %76 = arith.mulf %73, %75 : vector<16x16x32xf32>
    %77 = arith.addf %71, %76 : vector<16x16x32xf32>
    %c0_79 = arith.constant 0 : index
    %c0_80 = arith.constant 0 : index
    %c2_81 = arith.constant 2 : index
    %c2_82 = arith.constant 2 : index
    %c0_83 = arith.constant 0 : index
    %78 = vector.load %arg9[%c0_79, %c0_80, %c2_81, %c2_82, %c0_83] : memref<1x1x18x18x32xf32, #tpu.memory_space<vmem>>, vector<1x1x16x16x32xf32>
    %79 = vector.shape_cast %78 : vector<1x1x16x16x32xf32> to vector<16x16x32xf32>
    %80 = vector.extract_strided_slice %29 {offsets = [2, 2, 0], sizes = [1, 1, 32], strides = [1, 1, 1]} : vector<3x3x32xf32> to vector<1x1x32xf32>
    %81 = vector.broadcast %80 : vector<1x1x32xf32> to vector<16x16x32xf32>
    %82 = arith.mulf %79, %81 : vector<16x16x32xf32>
    %83 = arith.addf %77, %82 : vector<16x16x32xf32>
    %84 = vector.shape_cast %30 : vector<1x32xf32> to vector<1x1x32xf32>
    %85 = vector.broadcast %84 : vector<1x1x32xf32> to vector<16x16x32xf32>
    %86 = arith.addf %83, %85 : vector<16x16x32xf32>
    %cst_84 = arith.constant 0.000000e+00 : f32
    %cst_85 = arith.constant 6.000000e+00 : f32
    %87 = vector.broadcast %cst_84 : f32 to vector<16x16x32xf32>
    %88 = arith.maximumf %87, %86 : vector<16x16x32xf32>
    %89 = vector.broadcast %cst_85 : f32 to vector<16x16x32xf32>
    %90 = arith.minimumf %89, %88 : vector<16x16x32xf32>
    %91 = vector.shape_cast %90 : vector<16x16x32xf32> to vector<256x32xf32>
    %c0_86 = arith.constant 0 : index
    %c0_87 = arith.constant 0 : index
    %92 = vector.load %arg6[%c0_86, %c0_87] : memref<32x8xf32, #tpu.memory_space<vmem>>, vector<32x8xf32>
    %cst_88 = arith.constant dense<0.000000e+00> : vector<256x8xf32>
    %93 = tpu.matmul %91, %92, %cst_88 {dimension_numbers = #tpu.dot_dimension_numbers<[1], [0], [0], [1], [0, 0, 1, 1], [], []>} : vector<256x32xf32>, vector<32x8xf32>, vector<256x8xf32> -> vector<256x8xf32>
    %c0_89 = arith.constant 0 : index
    %c0_90 = arith.constant 0 : index
    %94 = vector.load %arg7[%c0_89, %c0_90] : memref<1x8xf32, #tpu.memory_space<vmem>>, vector<1x8xf32>
    %95 = vector.broadcast %94 : vector<1x8xf32> to vector<256x8xf32>
    %96 = arith.addf %93, %95 : vector<256x8xf32>
    %c0_91 = arith.constant 0 : index
    %c0_92 = arith.constant 0 : index
    %c0_93 = arith.constant 0 : index
    %c0_94 = arith.constant 0 : index
    %c0_95 = arith.constant 0 : index
    %97 = vector.load %arg1[%c0_91, %c0_92, %c0_93, %c0_94, %c0_95] : memref<1x1x1x256x8xf32, #tpu.memory_space<vmem>>, vector<1x1x1x256x8xf32>
    %98 = vector.shape_cast %97 : vector<1x1x1x256x8xf32> to vector<256x8xf32>
    %99 = arith.addf %96, %98 : vector<256x8xf32>
    %c0_96 = arith.constant 0 : index
    %c0_97 = arith.constant 0 : index
    %c0_98 = arith.constant 0 : index
    %100 = vector.load %arg8[%c0_96, %c0_97, %c0_98] : memref<1x256x8xf32, #tpu.memory_space<vmem>>, vector<1x256x8xf32>
    %101 = vector.shape_cast %100 : vector<1x256x8xf32> to vector<256x8xf32>
    %102 = vector.shape_cast %99 : vector<256x8xf32> to vector<1x256x8xf32>
    tpu.vector_store %arg8[%c0_96, %c0_97, %c0_98], %102 {strides = array<i32>} : memref<1x256x8xf32, #tpu.memory_space<vmem>>, vector<1x256x8xf32>,
    return
  }
  func.func @transform_0(%arg0: i32) -> (i32, i32, i32, i32, i32) {
    %c0_i32 = arith.constant 0 : i32
    %c0_i32_0 = arith.constant 0 : i32
    %c0_i32_1 = arith.constant 0 : i32
    %c0_i32_2 = arith.constant 0 : i32
    %c0_i32_3 = arith.constant 0 : i32
    return %arg0, %c0_i32, %c0_i32_0, %c0_i32_1, %c0_i32_2 : i32, i32, i32, i32, i32
  }
  func.func @transform_1(%arg0: i32) -> (i32, i32) {
    %c0_i32 = arith.constant 0 : i32
    %c0_i32_0 = arith.constant 0 : i32
    %c0_i32_1 = arith.constant 0 : i32
    return %c0_i32, %c0_i32_0 : i32, i32
  }
  func.func @transform_2(%arg0: i32) -> (i32, i32) {
    %c0_i32 = arith.constant 0 : i32
    %c0_i32_0 = arith.constant 0 : i32
    %c0_i32_1 = arith.constant 0 : i32
    return %c0_i32, %c0_i32_0 : i32, i32
  }
  func.func @transform_3(%arg0: i32) -> (i32, i32, i32) {
    %c0_i32 = arith.constant 0 : i32
    %c0_i32_0 = arith.constant 0 : i32
    %c0_i32_1 = arith.constant 0 : i32
    %c0_i32_2 = arith.constant 0 : i32
    return %c0_i32, %c0_i32_0, %c0_i32_1 : i32, i32, i32
  }
  func.func @transform_4(%arg0: i32) -> (i32, i32) {
    %c0_i32 = arith.constant 0 : i32
    %c0_i32_0 = arith.constant 0 : i32
    %c0_i32_1 = arith.constant 0 : i32
    return %c0_i32, %c0_i32_0 : i32, i32
  }
  func.func @transform_5(%arg0: i32) -> (i32, i32) {
    %c0_i32 = arith.constant 0 : i32
    %c0_i32_0 = arith.constant 0 : i32
    %c0_i32_1 = arith.constant 0 : i32
    return %c0_i32, %c0_i32_0 : i32, i32
  }
  func.func @transform_6(%arg0: i32) -> (i32, i32) {
    %c0_i32 = arith.constant 0 : i32
    %c0_i32_0 = arith.constant 0 : i32
    %c0_i32_1 = arith.constant 0 : i32
    return %c0_i32, %c0_i32_0 : i32, i32
  }
  func.func @transform_7(%arg0: i32) -> (i32, i32, i32) {
    %c0_i32 = arith.constant 0 : i32
    %c0_i32_0 = arith.constant 0 : i32
    %c0_i32_1 = arith.constant 0 : i32
    return %arg0, %c0_i32, %c0_i32_0 : i32, i32, i32
  }
}

</mosaic_0001>

<llo_original>
// kernel: tpu_custom_call.1
$region0: #{tpu_custom_call.1}
  #allocation0 [shape = 'u32[]', space=smem, size = 0x4, offset = 0x4, fixed_abs, tag = 'smem constant byte address 0x4 - core index']
  #allocation1 [shape = 'u32[144,128]{1,0:T(1,128)}', space=vmem, size = 0x12000, scoped, tag = 'internal scratch']
  #allocation2 [shape = 'f32[1,1,18,18,32]{4,3,2,1,0:T(8,128)}', space=vmem, size = 0x36000, scoped, tag = 'scratch operand']
  %s0 = inlined_call_operand.vmem [shape: f32[2,1,1,256,8], index: 0, kind: input, shape index: {}]
  %s1 = inlined_call_operand.vmem [shape: f32[8,32], index: 1, kind: input, shape index: {}]
  %s2 = inlined_call_operand.vmem [shape: f32[1,32], index: 2, kind: input, shape index: {}]
  %s3 = inlined_call_operand.vmem [shape: f32[3,3,32], index: 3, kind: input, shape index: {}]
  %s4 = inlined_call_operand.vmem [shape: f32[1,32], index: 4, kind: input, shape index: {}]
  %s5 = inlined_call_operand.vmem [shape: f32[32,8], index: 5, kind: input, shape index: {}]
  %s6 = inlined_call_operand.vmem [shape: f32[1,8], index: 6, kind: input, shape index: {}]
  %s7 = inlined_call_operand.vmem [shape: f32[2,256,8], index: 7, kind: output, shape index: {}]
  %s8 = sld [smem:[#allocation0]]
  $region61: #{tpu_custom_call.1} parent=0
    _
  %s10 = ssub.s32 1, %s8
  %s11 = scalar_select 0, %s10, %s8
  loop: start=0, step=1, limit=4
  $region2: #{tpu_custom_call.1} parent=0 // loop_pre_header
    _
  $region3: #{tpu_custom_call.1} parent=0 // loop_header
    %s13 = sphi 0, %s17
    %p14 = scmp.ge.s32.totalorder %s13, 4
    %s23 = sphi 0, %s25
    %s26 = sphi 0, %s23
    %s27 = sphi 0, %s26
    %s43 = sphi 0, %s27
    %s47 = sphi 0, %s47
    %s49 = sphi 0, %s47
    %s50 = sphi 0, %s49
    %s64 = sphi 0, %s50
    %s68 = sphi 0, %s68
    %s70 = sphi 0, %s68
    %s71 = sphi 0, %s70
    %s85 = sphi 0, %s71
    %s89 = sphi 0, %s89
    %s91 = sphi 0, %s89
    %s92 = sphi 0, %s91
    %s106 = sphi 0, %s92
    %s110 = sphi 0, %s110
    %s112 = sphi 0, %s110
    %s113 = sphi 0, %s112
    %s127 = sphi 0, %s113
    %s131 = sphi 0, %s131
    %s133 = sphi 0, %s131
    %s134 = sphi 0, %s133
    %s148 = sphi 0, %s134
    %s152 = sphi 0, %s152
    %s154 = sphi 0, %s152
    %s155 = sphi 0, %s154
    %s169 = sphi 0, %s155
    %s175 = sphi 0, %s177
    %s178 = sphi 0, %s175
    %s179 = sphi 0, %s178
    %s195 = sphi 0, %s179
  $region4: #{tpu_custom_call.1} parent=0 // loop_header_branch
    %16 = sbr.rel (%p14) target = $region8
  $region5: #{tpu_custom_call.1} parent=0 // loop_body
    %s18 = ssub.s32 %s13, 1
    %s19 = ssub.s32 %s13, 2
    %s20 = sadd.s32 %s13, 1
    %s21 = ssub.s32 %s13, %s20
    %p22 = scmp.eq.s32.totalorder %s21, 0
    %s24 = sadd.s32 %s23, 1
    %s25 = scalar_select %p22, %s23, %s24
    %p28 = pneg %p22
    %p29 = scmp.eq.s32.totalorder %s13, 1
    %p30 = por %p28, %p29
    %p31 = scmp.ne.s32.totalorder %s23, %s26
    %p32 = scmp.eq.s32.totalorder %s13, 0
    %p33 = por %p31, %p32
    %p34 = scmp.ne.s32.totalorder %s23, %s26
    %p35 = scmp.eq.s32.totalorder %s18, 1
    %p36 = por %p34, %p35
    %p37 = scmp.ne.s32.totalorder %s26, %s27
    %p38 = scmp.eq.s32.totalorder %s18, 0
    %p39 = por %p37, %p38
    %p40 = scmp.ne.s32.totalorder %s26, %s27
    %p41 = scmp.eq.s32.totalorder %s19, 1
    %p42 = por %p40, %p41
    %p44 = scmp.ne.s32.totalorder %s27, %s43
    %p45 = scmp.eq.s32.totalorder %s19, 0
    %p46 = por %p44, %p45
    %s48 = sadd.s32 %s47, 1
    %p51 = scmp.eq.s32.totalorder %s13, 1
    %p52 = scmp.ne.s32.totalorder %s47, %s49
    %p53 = scmp.eq.s32.totalorder %s13, 0
    %p54 = por %p52, %p53
    %p55 = scmp.ne.s32.totalorder %s47, %s49
    %p56 = scmp.eq.s32.totalorder %s18, 1
    %p57 = por %p55, %p56
    %p58 = scmp.ne.s32.totalorder %s49, %s50
    %p59 = scmp.eq.s32.totalorder %s18, 0
    %p60 = por %p58, %p59
    %p61 = scmp.ne.s32.totalorder %s49, %s50
    %p62 = scmp.eq.s32.totalorder %s19, 1
    %p63 = por %p61, %p62
    %p65 = scmp.ne.s32.totalorder %s50, %s64
    %p66 = scmp.eq.s32.totalorder %s19, 0
    %p67 = por %p65, %p66
    %s69 = sadd.s32 %s68, 1
    %p72 = scmp.eq.s32.totalorder %s13, 1
    %p73 = scmp.ne.s32.totalorder %s68, %s70
    %p74 = scmp.eq.s32.totalorder %s13, 0
    %p75 = por %p73, %p74
    %p76 = scmp.ne.s32.totalorder %s68, %s70
    %p77 = scmp.eq.s32.totalorder %s18, 1
    %p78 = por %p76, %p77
    %p79 = scmp.ne.s32.totalorder %s70, %s71
    %p80 = scmp.eq.s32.totalorder %s18, 0
    %p81 = por %p79, %p80
    %p82 = scmp.ne.s32.totalorder %s70, %s71
    %p83 = scmp.eq.s32.totalorder %s19, 1
    %p84 = por %p82, %p83
    %p86 = scmp.ne.s32.totalorder %s71, %s85
    %p87 = scmp.eq.s32.totalorder %s19, 0
    %p88 = por %p86, %p87
    %s90 = sadd.s32 %s89, 1
    %p93 = scmp.eq.s32.totalorder %s13, 1
    %p94 = scmp.ne.s32.totalorder %s89, %s91
    %p95 = scmp.eq.s32.totalorder %s13, 0
    %p96 = por %p94, %p95
    %p97 = scmp.ne.s32.totalorder %s89, %s91
    %p98 = scmp.eq.s32.totalorder %s18, 1
    %p99 = por %p97, %p98
    %p100 = scmp.ne.s32.totalorder %s91, %s92
    %p101 = scmp.eq.s32.totalorder %s18, 0
    %p102 = por %p100, %p101
    %p103 = scmp.ne.s32.totalorder %s91, %s92
    %p104 = scmp.eq.s32.totalorder %s19, 1
    %p105 = por %p103, %p104
    %p107 = scmp.ne.s32.totalorder %s92, %s106
    %p108 = scmp.eq.s32.totalorder %s19, 0
    %p109 = por %p107, %p108
    %s111 = sadd.s32 %s110, 1
    %p114 = scmp.eq.s32.totalorder %s13, 1
    %p115 = scmp.ne.s32.totalorder %s110, %s112
    %p116 = scmp.eq.s32.totalorder %s13, 0
    %p117 = por %p115, %p116
    %p118 = scmp.ne.s32.totalorder %s110, %s112
    %p119 = scmp.eq.s32.totalorder %s18, 1
    %p120 = por %p118, %p119
    %p121 = scmp.ne.s32.totalorder %s112, %s113
    %p122 = scmp.eq.s32.totalorder %s18, 0
    %p123 = por %p121, %p122
    %p124 = scmp.ne.s32.totalorder %s112, %s113
    %p125 = scmp.eq.s32.totalorder %s19, 1
    %p126 = por %p124, %p125
    %p128 = scmp.ne.s32.totalorder %s113, %s127
    %p129 = scmp.eq.s32.totalorder %s19, 0
    %p130 = por %p128, %p129
    %s132 = sadd.s32 %s131, 1
    %p135 = scmp.eq.s32.totalorder %s13, 1
    %p136 = scmp.ne.s32.totalorder %s131, %s133
    %p137 = scmp.eq.s32.totalorder %s13, 0
    %p138 = por %p136, %p137
    %p139 = scmp.ne.s32.totalorder %s131, %s133
    %p140 = scmp.eq.s32.totalorder %s18, 1
    %p141 = por %p139, %p140
    %p142 = scmp.ne.s32.totalorder %s133, %s134
    %p143 = scmp.eq.s32.totalorder %s18, 0
    %p144 = por %p142, %p143
    %p145 = scmp.ne.s32.totalorder %s133, %s134
    %p146 = scmp.eq.s32.totalorder %s19, 1
    %p147 = por %p145, %p146
    %p149 = scmp.ne.s32.totalorder %s134, %s148
    %p150 = scmp.eq.s32.totalorder %s19, 0
    %p151 = por %p149, %p150
    %s153 = sadd.s32 %s152, 1
    %p156 = scmp.eq.s32.totalorder %s13, 1
    %p157 = scmp.ne.s32.totalorder %s152, %s154
    %p158 = scmp.eq.s32.totalorder %s13, 0
    %p159 = por %p157, %p158
    %p160 = scmp.ne.s32.totalorder %s152, %s154
    %p161 = scmp.eq.s32.totalorder %s18, 1
    %p162 = por %p160, %p161
    %p163 = scmp.ne.s32.totalorder %s154, %s155
    %p164 = scmp.eq.s32.totalorder %s18, 0
    %p165 = por %p163, %p164
    %p166 = scmp.ne.s32.totalorder %s154, %s155
    %p167 = scmp.eq.s32.totalorder %s19, 1
    %p168 = por %p166, %p167
    %p170 = scmp.ne.s32.totalorder %s155, %s169
    %p171 = scmp.eq.s32.totalorder %s19, 0
    %p172 = por %p170, %p171
    %s173 = ssub.s32 %s13, %s20
    %p174 = scmp.eq.s32.totalorder %s173, 0
    %s176 = sadd.s32 %s175, 1
    %s177 = scalar_select %p174, %s175, %s176
    %p180 = pneg %p174
    %p181 = scmp.eq.s32.totalorder %s13, 1
    %p182 = por %p180, %p181
    %p183 = scmp.ne.s32.totalorder %s175, %s178
    %p184 = scmp.eq.s32.totalorder %s13, 0
    %p185 = por %p183, %p184
    %p186 = scmp.ne.s32.totalorder %s175, %s178
    %p187 = scmp.eq.s32.totalorder %s18, 1
    %p188 = por %p186, %p187
    %p189 = scmp.ne.s32.totalorder %s178, %s179
    %p190 = scmp.eq.s32.totalorder %s18, 0
    %p191 = por %p189, %p190
    %p192 = scmp.ne.s32.totalorder %s178, %s179
    %p193 = scmp.eq.s32.totalorder %s19, 1
    %p194 = por %p192, %p193
    %p196 = scmp.ne.s32.totalorder %s179, %s195
    %p197 = scmp.eq.s32.totalorder %s19, 0
    %p198 = por %p196, %p197
    %p199 = scmp.le.s32.totalorder 1, %s13
    %p200 = scmp.lt.s32.totalorder %s13, 3
    %p201 = pnand %p199, %p200
    %p202 = pneg %p201
    // Predicated region
    $region9: #{tpu_custom_call.1} parent=5 // pred_check
      _
    $region10: #{tpu_custom_call.1} parent=5 // pred_check_branch
      %204 = sbr.rel (%p201) target = $region12
    $region11: #{tpu_custom_call.1} parent=5 // pred_region
      %s205 = ssub.s32 %s13, 1
      // Predicated region
      $region13: #{tpu_custom_call.1} parent=11 // pred_check
        %p206 = pneg %p60
      $region14: #{tpu_custom_call.1} parent=11 // pred_check_branch
        %208 = sbr.rel (%p206) target = $region16
      $region15: #{tpu_custom_call.1} parent=11 // pred_region
        _
      $region16: #{tpu_custom_call.1} parent=11 // pred_fallthru
        _
      // Predicated region
      $region17: #{tpu_custom_call.1} parent=11 // pred_check
        %p209 = pneg %p81
      $region18: #{tpu_custom_call.1} parent=11 // pred_check_branch
        %211 = sbr.rel (%p209) target = $region20
      $region19: #{tpu_custom_call.1} parent=11 // pred_region
        _
      $region20: #{tpu_custom_call.1} parent=11 // pred_fallthru
        _
      // Predicated region
      $region21: #{tpu_custom_call.1} parent=11 // pred_check
        %p212 = pneg %p102
      $region22: #{tpu_custom_call.1} parent=11 // pred_check_branch
        %214 = sbr.rel (%p212) target = $region24
      $region23: #{tpu_custom_call.1} parent=11 // pred_region
        _
      $region24: #{tpu_custom_call.1} parent=11 // pred_fallthru
        _
      // Predicated region
      $region25: #{tpu_custom_call.1} parent=11 // pred_check
        %p215 = pneg %p123
      $region26: #{tpu_custom_call.1} parent=11 // pred_check_branch
        %217 = sbr.rel (%p215) target = $region28
      $region27: #{tpu_custom_call.1} parent=11 // pred_region
        _
      $region28: #{tpu_custom_call.1} parent=11 // pred_fallthru
        _
      // Predicated region
      $region29: #{tpu_custom_call.1} parent=11 // pred_check
        %p218 = pneg %p144
      $region30: #{tpu_custom_call.1} parent=11 // pred_check_branch
        %220 = sbr.rel (%p218) target = $region32
      $region31: #{tpu_custom_call.1} parent=11 // pred_region
        _
      $region32: #{tpu_custom_call.1} parent=11 // pred_fallthru
        _
      // Predicated region
      $region33: #{tpu_custom_call.1} parent=11 // pred_check
        %p221 = pneg %p165
      $region34: #{tpu_custom_call.1} parent=11 // pred_check_branch
        %223 = sbr.rel (%p221) target = $region36
      $region35: #{tpu_custom_call.1} parent=11 // pred_region
        _
      $region36: #{tpu_custom_call.1} parent=11 // pred_fallthru
        _
    $region12: #{tpu_custom_call.1} parent=5 // pred_fallthru
      _
    %p224 = scmp.lt.s32.totalorder %s13, 2
    // Predicated region
    $region37: #{tpu_custom_call.1} parent=5 // pred_check
      %p225 = pneg %p224
    $region38: #{tpu_custom_call.1} parent=5 // pred_check_branch
      %227 = sbr.rel (%p225) target = $region40
    $region39: #{tpu_custom_call.1} parent=5 // pred_region
      // Predicated region
      $region41: #{tpu_custom_call.1} parent=39 // pred_check
        %p228 = pneg %p33
      $region42: #{tpu_custom_call.1} parent=39 // pred_check_branch
        %230 = sbr.rel (%p228) target = $region44
      $region43: #{tpu_custom_call.1} parent=39 // pred_region
        %p231 = scmp.lt.s32.totalorder %s13, 1
        %s232 = scalar_select %p231, %s13, 1
        %s233 = smul.addr %s232, 32
        %s234 = smul.addr %s233, 8
        %s235 = scalar_lea.vmem %s0, %s234
      $region44: #{tpu_custom_call.1} parent=39 // pred_fallthru
        _
    $region40: #{tpu_custom_call.1} parent=5 // pred_fallthru
      _
    %p236 = scmp.le.s32.totalorder 1, %s13
    %p237 = scmp.lt.s32.totalorder %s13, 3
    %p238 = pnand %p236, %p237
    %p239 = pneg %p238
    // Predicated region
    $region45: #{tpu_custom_call.1} parent=5 // pred_check
      _
    $region46: #{tpu_custom_call.1} parent=5 // pred_check_branch
      %241 = sbr.rel (%p238) target = $region48
    $region47: #{tpu_custom_call.1} parent=5 // pred_region
      %s242 = ssub.s32 %s13, 1
      %p243 = scmp.lt.s32.totalorder %s18, 1
      %s244 = scalar_select %p243, %s18, 1
      %s245 = smul.addr %s244, 32
      %s246 = smul.addr %s245, 8
      %s247 = scalar_lea.vmem %s0, %s246
      %p248 = pneg %p39
      %p249 = pneg %p36
      %p250 = pneg %p60
      %p251 = pneg %p57
      %p252 = pneg %p81
      %p253 = pneg %p78
      %p254 = pneg %p102
      %p255 = pneg %p99
      %p256 = pneg %p123
      %p257 = pneg %p120
      %p258 = pneg %p144
      %p259 = pneg %p141
      %p260 = pneg %p165
      %p261 = pneg %p162
      %p262 = pneg %p191
      %p263 = pneg %p188
      %p264 = scmp.lt.s32.totalorder %s18, 1
      %s265 = scalar_select %p264, %s18, 1
      %s266 = smul.addr %s265, 32
      %s267 = smul.addr %s266, 8
      %s268 = scalar_lea.vmem %s7, %s267
      %p269 = scmp.lt.s32.totalorder %s18, 1
      %s270 = scalar_select %p269, %s18, 1
      %s271 = smul.addr %s270, 32
      %s272 = smul.addr %s271, 8
      %s273 = scalar_lea.vmem %s0, %s272
      %p274 = scmp.lt.s32.totalorder %s18, 1
      %s275 = scalar_select %p274, %s18, 1
      %s276 = smul.addr %s275, 32
      %s277 = smul.addr %s276, 8
      %s278 = scalar_lea.vmem %s7, %s277
      %v279 = vld [vmem:[%s1] sm:$0xff]
      %v280 = vld [vmem:[%s2] sm:$0x1]
      %v281 = vld [vmem:[%s273] sm:$0xff]
      %v282 = vld [vmem:[%s273 + $0x8] sm:$0xff]
      %v283 = vld [vmem:[%s273 + $0x10] sm:$0xff]
      %v284 = vld [vmem:[%s273 + $0x18] sm:$0xff]
      %v285 = vld [vmem:[%s273 + $0x20] sm:$0xff]
      %v286 = vld [vmem:[%s273 + $0x28] sm:$0xff]
      %v287 = vld [vmem:[%s273 + $0x30] sm:$0xff]
      %v288 = vld [vmem:[%s273 + $0x38] sm:$0xff]
      %v289 = vld [vmem:[%s273 + $0x40] sm:$0xff]
      %v290 = vld [vmem:[%s273 + $0x48] sm:$0xff]
      %v291 = vld [vmem:[%s273 + $0x50] sm:$0xff]
      %v292 = vld [vmem:[%s273 + $0x58] sm:$0xff]
      %v293 = vld [vmem:[%s273 + $0x60] sm:$0xff]
      %v294 = vld [vmem:[%s273 + $0x68] sm:$0xff]
      %v295 = vld [vmem:[%s273 + $0x70] sm:$0xff]
      %v296 = vld [vmem:[%s273 + $0x78] sm:$0xff]
      %v297 = vld [vmem:[%s273 + $0x80] sm:$0xff]
      %v298 = vld [vmem:[%s273 + $0x88] sm:$0xff]
      %v299 = vld [vmem:[%s273 + $0x90] sm:$0xff]
      %v300 = vld [vmem:[%s273 + $0x98] sm:$0xff]
      %v301 = vld [vmem:[%s273 + $0xa0] sm:$0xff]
      %v302 = vld [vmem:[%s273 + $0xa8] sm:$0xff]
      %v303 = vld [vmem:[%s273 + $0xb0] sm:$0xff]
      %v304 = vld [vmem:[%s273 + $0xb8] sm:$0xff]
      %v305 = vld [vmem:[%s273 + $0xc0] sm:$0xff]
      %v306 = vld [vmem:[%s273 + $0xc8] sm:$0xff]
      %v307 = vld [vmem:[%s273 + $0xd0] sm:$0xff]
      %v308 = vld [vmem:[%s273 + $0xd8] sm:$0xff]
      %v309 = vld [vmem:[%s273 + $0xe0] sm:$0xff]
      %v310 = vld [vmem:[%s273 + $0xe8] sm:$0xff]
      %v311 = vld [vmem:[%s273 + $0xf0] sm:$0xff]
      %v312 = vld [vmem:[%s273 + $0xf8] sm:$0xff]
      %v314 = vlaneseq
      %v315 = vshrl.u32 %v314, 7
      %v316 = vsub.s32 0, %v315
      %v317 = vrot.slane %v280, %v316
      %vm319 = vcmask 64512
      %v321 = vsel %vm319, %v281, 0
      %v324 = vsel %vm319, %v282, 0
      %v327 = vsel %vm319, %v283, 0
      %v330 = vsel %vm319, %v284, 0
      %v333 = vsel %vm319, %v285, 0
      %v336 = vsel %vm319, %v286, 0
      %v339 = vsel %vm319, %v287, 0
      %v342 = vsel %vm319, %v288, 0
      %v345 = vsel %vm319, %v289, 0
      %v348 = vsel %vm319, %v290, 0
      %v351 = vsel %vm319, %v291, 0
      %v354 = vsel %vm319, %v292, 0
      %v357 = vsel %vm319, %v293, 0
      %v360 = vsel %vm319, %v294, 0
      %v363 = vsel %vm319, %v295, 0
      %v366 = vsel %vm319, %v296, 0
      %v369 = vsel %vm319, %v297, 0
      %v372 = vsel %vm319, %v298, 0
      %v375 = vsel %vm319, %v299, 0
      %v378 = vsel %vm319, %v300, 0
      %v381 = vsel %vm319, %v301, 0
      %v384 = vsel %vm319, %v302, 0
      %v387 = vsel %vm319, %v303, 0
      %v390 = vsel %vm319, %v304, 0
      %v393 = vsel %vm319, %v305, 0
      %v396 = vsel %vm319, %v306, 0
      %v399 = vsel %vm319, %v307, 0
      %v402 = vsel %vm319, %v308, 0
      %v405 = vsel %vm319, %v309, 0
      %v408 = vsel %vm319, %v310, 0
      %v411 = vsel %vm319, %v311, 0
      %v414 = vsel %vm319, %v312, 0
      %416 = vmatprep.subr.mxu0 0.0
      %417 = vmatpush1.msra.mxu0 %v279
      %418 = vmatprep.subr.mxu0 0.0
      %419 = vmatpush1.msra.mxu0 0.0
      %420 = vmatprep.subr.mxu0 0.0
      %421 = vmatpush1.msra.mxu0 0.0
      %422 = vmatprep.subr.mxu0 0.0
      %423 = vmatpush1.msra.mxu0 0.0
      %424 = vmatprep.subr.mxu0 0.0
      %425 = vmatpush1.msra.mxu0 0.0
      %426 = vmatprep.subr.mxu0 0.0
      %427 = vmatpush1.msra.mxu0 0.0
      %428 = vmatprep.subr.mxu0 0.0
      %429 = vmatpush1.msra.mxu0 0.0
      %430 = vmatprep.subr.mxu0 0.0
      %431 = vmatpush1.msra.mxu0 0.0
      %432 = vmatprep.subr.mxu0 0.0
      %433 = vmatpush1.msra.mxu0 0.0
      %434 = vmatprep.subr.mxu0 0.0
      %435 = vmatpush1.msra.mxu0 0.0
      %436 = vmatprep.subr.mxu0 0.0
      %437 = vmatpush1.msra.mxu0 0.0
      %438 = vmatprep.subr.mxu0 0.0
      %439 = vmatpush1.msra.mxu0 0.0
      %440 = vmatprep.subr.mxu0 0.0
      %441 = vmatpush1.msra.mxu0 0.0
      %442 = vmatprep.subr.mxu0 0.0
      %443 = vmatpush1.msra.mxu0 0.0
      %444 = vmatprep.subr.mxu0 0.0
      %445 = vmatpush1.msra.mxu0 0.0
      %446 = vmatprep.subr.mxu0 0.0
      %447 = vmatpush1.msra.mxu0 0.0
      %448 = vmatprep.subr.mxu0 0.0
      %449 = vmatpush1.msra.mxu0 0.0
      %450 = vmatprep.subr.mxu0 0.0
      %451 = vmatpush1.msra.mxu0 0.0
      %452 = vmatprep.subr.mxu0 0.0
      %453 = vmatpush1.msra.mxu0 0.0
      %454 = vmatprep.subr.mxu0 0.0
      %455 = vmatpush1.msra.mxu0 0.0
      %456 = vmatprep.subr.mxu0 0.0
      %457 = vmatpush1.msra.mxu0 0.0
      %458 = vmatprep.subr.mxu0 0.0
      %459 = vmatpush1.msra.mxu0 0.0
      %460 = vmatprep.subr.mxu0 0.0
      %461 = vmatpush1.msra.mxu0 0.0
      %462 = vmatprep.subr.mxu0 0.0
      %463 = vmatpush1.msra.mxu0 0.0
      %464 = vmatprep.subr.mxu0 0.0
      %465 = vmatpush1.msra.mxu0 0.0
      %466 = vmatprep.subr.mxu0 0.0
      %467 = vmatpush1.msra.mxu0 0.0
      %468 = vmatprep.subr.mxu0 0.0
      %469 = vmatpush1.msra.mxu0 0.0
      %470 = vmatprep.subr.mxu0 0.0
      %471 = vmatpush1.msra.mxu0 0.0
      %472 = vmatprep.subr.mxu0 0.0
      %473 = vmatpush1.msra.mxu0 0.0
      %474 = vmatprep.subr.mxu0 0.0
      %475 = vmatpush1.msra.mxu0 0.0
      %476 = vmatprep.subr.mxu0 0.0
      %477 = vmatpush1.msra.mxu0 0.0
      %478 = vmatprep.subr.mxu0 0.0
      %479 = vmatpush1.msra.mxu0 0.0
      %480 = vmatprep.mubr.f32.mxu0 0.0
      %481 = vmatmul.mubr.f32.gmra.mrb[0].mxu0 %v321
      %v482 = vpop.f32.mrb[0].mxu0
      %v483 = vadd.f32 %v317, %v482
      %v484 = vpop.f32.mrb[0].mxu0
      %485 = vmatprep.mubr.f32.mxu0 0.0
      %486 = vmatmul.mubr.f32.gmra.mrb[0].mxu0 %v324
      %v487 = vpop.f32.mrb[0].mxu0
      %v488 = vadd.f32 %v317, %v487
      %v489 = vpop.f32.mrb[0].mxu0
      %490 = vmatprep.mubr.f32.mxu0 0.0
      %491 = vmatmul.mubr.f32.gmra.mrb[0].mxu0 %v327
      %v492 = vpop.f32.mrb[0].mxu0
      %v493 = vadd.f32 %v317, %v492
      %v494 = vpop.f32.mrb[0].mxu0
      %495 = vmatprep.mubr.f32.mxu0 0.0
      %496 = vmatmul.mubr.f32.gmra.mrb[0].mxu0 %v330
      %v497 = vpop.f32.mrb[0].mxu0
      %v498 = vadd.f32 %v317, %v497
      %v499 = vpop.f32.mrb[0].mxu0
      %500 = vmatprep.mubr.f32.mxu0 0.0
      %501 = vmatmul.mubr.f32.gmra.mrb[0].mxu0 %v333
      %v502 = vpop.f32.mrb[0].mxu0
      %v503 = vadd.f32 %v317, %v502
      %v504 = vpop.f32.mrb[0].mxu0
      %505 = vmatprep.mubr.f32.mxu0 0.0
      %506 = vmatmul.mubr.f32.gmra.mrb[0].mxu0 %v336
      %v507 = vpop.f32.mrb[0].mxu0
      %v508 = vadd.f32 %v317, %v507
      %v509 = vpop.f32.mrb[0].mxu0
      %510 = vmatprep.mubr.f32.mxu0 0.0
      %511 = vmatmul.mubr.f32.gmra.mrb[0].mxu0 %v339
      %v512 = vpop.f32.mrb[0].mxu0
      %v513 = vadd.f32 %v317, %v512
      %v514 = vpop.f32.mrb[0].mxu0
      %515 = vmatprep.mubr.f32.mxu0 0.0
      %516 = vmatmul.mubr.f32.gmra.mrb[0].mxu0 %v342
      %v517 = vpop.f32.mrb[0].mxu0
      %v518 = vadd.f32 %v317, %v517
      %v519 = vpop.f32.mrb[0].mxu0
      %520 = vmatprep.mubr.f32.mxu0 0.0
      %521 = vmatmul.mubr.f32.gmra.mrb[0].mxu0 %v345
      %v522 = vpop.f32.mrb[0].mxu0
      %v523 = vadd.f32 %v317, %v522
      %v524 = vpop.f32.mrb[0].mxu0
      %525 = vmatprep.mubr.f32.mxu0 0.0
      %526 = vmatmul.mubr.f32.gmra.mrb[0].mxu0 %v348
      %v527 = vpop.f32.mrb[0].mxu0
      %v528 = vadd.f32 %v317, %v527
      %v529 = vpop.f32.mrb[0].mxu0
      %530 = vmatprep.mubr.f32.mxu0 0.0
      %531 = vmatmul.mubr.f32.gmra.mrb[0].mxu0 %v351
      %v532 = vpop.f32.mrb[0].mxu0
      %v533 = vadd.f32 %v317, %v532
      %v534 = vpop.f32.mrb[0].mxu0
      %535 = vmatprep.mubr.f32.mxu0 0.0
      %536 = vmatmul.mubr.f32.gmra.mrb[0].mxu0 %v354
      %v537 = vpop.f32.mrb[0].mxu0
      %v538 = vadd.f32 %v317, %v537
      %v539 = vpop.f32.mrb[0].mxu0
      %540 = vmatprep.mubr.f32.mxu0 0.0
      %541 = vmatmul.mubr.f32.gmra.mrb[0].mxu0 %v357
      %v542 = vpop.f32.mrb[0].mxu0
      %v543 = vadd.f32 %v317, %v542
      %v544 = vpop.f32.mrb[0].mxu0
      %545 = vmatprep.mubr.f32.mxu0 0.0
      %546 = vmatmul.mubr.f32.gmra.mrb[0].mxu0 %v360
      %v547 = vpop.f32.mrb[0].mxu0
      %v548 = vadd.f32 %v317, %v547
      %v549 = vpop.f32.mrb[0].mxu0
      %550 = vmatprep.mubr.f32.mxu0 0.0
      %551 = vmatmul.mubr.f32.gmra.mrb[0].mxu0 %v363
      %v552 = vpop.f32.mrb[0].mxu0
      %v553 = vadd.f32 %v317, %v552
      %v554 = vpop.f32.mrb[0].mxu0
      %555 = vmatprep.mubr.f32.mxu0 0.0
      %556 = vmatmul.mubr.f32.gmra.mrb[0].mxu0 %v366
      %v557 = vpop.f32.mrb[0].mxu0
      %v558 = vadd.f32 %v317, %v557
      %v559 = vpop.f32.mrb[0].mxu0
      %560 = vmatprep.mubr.f32.mxu0 0.0
      %561 = vmatmul.mubr.f32.gmra.mrb[0].mxu0 %v369
      %v562 = vpop.f32.mrb[0].mxu0
      %v563 = vadd.f32 %v317, %v562
      %v564 = vpop.f32.mrb[0].mxu0
      %565 = vmatprep.mubr.f32.mxu0 0.0
      %566 = vmatmul.mubr.f32.gmra.mrb[0].mxu0 %v372
      %v567 = vpop.f32.mrb[0].mxu0
      %v568 = vadd.f32 %v317, %v567
      %v569 = vpop.f32.mrb[0].mxu0
      %570 = vmatprep.mubr.f32.mxu0 0.0
      %571 = vmatmul.mubr.f32.gmra.mrb[0].mxu0 %v375
      %v572 = vpop.f32.mrb[0].mxu0
      %v573 = vadd.f32 %v317, %v572
      %v574 = vpop.f32.mrb[0].mxu0
      %575 = vmatprep.mubr.f32.mxu0 0.0
      %576 = vmatmul.mubr.f32.gmra.mrb[0].mxu0 %v378
      %v577 = vpop.f32.mrb[0].mxu0
      %v578 = vadd.f32 %v317, %v577
      %v579 = vpop.f32.mrb[0].mxu0
      %580 = vmatprep.mubr.f32.mxu0 0.0
      %581 = vmatmul.mubr.f32.gmra.mrb[0].mxu0 %v381
      %v582 = vpop.f32.mrb[0].mxu0
      %v583 = vadd.f32 %v317, %v582
      %v584 = vpop.f32.mrb[0].mxu0
      %585 = vmatprep.mubr.f32.mxu0 0.0
      %586 = vmatmul.mubr.f32.gmra.mrb[0].mxu0 %v384
      %v587 = vpop.f32.mrb[0].mxu0
      %v588 = vadd.f32 %v317, %v587
      %v589 = vpop.f32.mrb[0].mxu0
      %590 = vmatprep.mubr.f32.mxu0 0.0
      %591 = vmatmul.mubr.f32.gmra.mrb[0].mxu0 %v387
      %v592 = vpop.f32.mrb[0].mxu0
      %v593 = vadd.f32 %v317, %v592
      %v594 = vpop.f32.mrb[0].mxu0
      %595 = vmatprep.mubr.f32.mxu0 0.0
      %596 = vmatmul.mubr.f32.gmra.mrb[0].mxu0 %v390
      %v597 = vpop.f32.mrb[0].mxu0
      %v598 = vadd.f32 %v317, %v597
      %v599 = vpop.f32.mrb[0].mxu0
      %600 = vmatprep.mubr.f32.mxu0 0.0
      %601 = vmatmul.mubr.f32.gmra.mrb[0].mxu0 %v393
      %v602 = vpop.f32.mrb[0].mxu0
      %v603 = vadd.f32 %v317, %v602
      %v604 = vpop.f32.mrb[0].mxu0
      %605 = vmatprep.mubr.f32.mxu0 0.0
      %606 = vmatmul.mubr.f32.gmra.mrb[0].mxu0 %v396
      %v607 = vpop.f32.mrb[0].mxu0
      %v608 = vadd.f32 %v317, %v607
      %v609 = vpop.f32.mrb[0].mxu0
      %610 = vmatprep.mubr.f32.mxu0 0.0
      %611 = vmatmul.mubr.f32.gmra.mrb[0].mxu0 %v399
      %v612 = vpop.f32.mrb[0].mxu0
      %v613 = vadd.f32 %v317, %v612
      %v614 = vpop.f32.mrb[0].mxu0
      %615 = vmatprep.mubr.f32.mxu0 0.0
      %616 = vmatmul.mubr.f32.gmra.mrb[0].mxu0 %v402
      %v617 = vpop.f32.mrb[0].mxu0
      %v618 = vadd.f32 %v317, %v617
      %v619 = vpop.f32.mrb[0].mxu0
      %620 = vmatprep.mubr.f32.mxu0 0.0
      %621 = vmatmul.mubr.f32.gmra.mrb[0].mxu0 %v405
      %v622 = vpop.f32.mrb[0].mxu0
      %v623 = vadd.f32 %v317, %v622
      %v624 = vpop.f32.mrb[0].mxu0
      %625 = vmatprep.mubr.f32.mxu0 0.0
      %626 = vmatmul.mubr.f32.gmra.mrb[0].mxu0 %v408
      %v627 = vpop.f32.mrb[0].mxu0
      %v628 = vadd.f32 %v317, %v627
      %v629 = vpop.f32.mrb[0].mxu0
      %630 = vmatprep.mubr.f32.mxu0 0.0
      %631 = vmatmul.mubr.f32.gmra.mrb[0].mxu0 %v411
      %v632 = vpop.f32.mrb[0].mxu0
      %v633 = vadd.f32 %v317, %v632
      %v634 = vpop.f32.mrb[0].mxu0
      %635 = vmatprep.mubr.f32.mxu0 0.0
      %636 = vmatmul.mubr.f32.gmra.mrb[0].mxu0 %v414
      %v637 = vpop.f32.mrb[0].mxu0
      %v638 = vadd.f32 %v317, %v637
      %v639 = vpop.f32.mrb[0].mxu0
      %640 = vdwg.mxu0
      %v641 = vmax.f32 %v483, 0.0
      %v642 = vmax.f32 %v488, 0.0
      %v643 = vmax.f32 %v493, 0.0
      %v644 = vmax.f32 %v498, 0.0
      %v645 = vmax.f32 %v503, 0.0
      %v646 = vmax.f32 %v508, 0.0
      %v647 = vmax.f32 %v513, 0.0
      %v648 = vmax.f32 %v518, 0.0
      %v649 = vmax.f32 %v523, 0.0
      %v650 = vmax.f32 %v528, 0.0
      %v651 = vmax.f32 %v533, 0.0
      %v652 = vmax.f32 %v538, 0.0
      %v653 = vmax.f32 %v543, 0.0
      %v654 = vmax.f32 %v548, 0.0
      %v655 = vmax.f32 %v553, 0.0
      %v656 = vmax.f32 %v558, 0.0
      %v657 = vmax.f32 %v563, 0.0
      %v658 = vmax.f32 %v568, 0.0
      %v659 = vmax.f32 %v573, 0.0
      %v660 = vmax.f32 %v578, 0.0
      %v661 = vmax.f32 %v583, 0.0
      %v662 = vmax.f32 %v588, 0.0
      %v663 = vmax.f32 %v593, 0.0
      %v664 = vmax.f32 %v598, 0.0
      %v665 = vmax.f32 %v603, 0.0
      %v666 = vmax.f32 %v608, 0.0
      %v667 = vmax.f32 %v613, 0.0
      %v668 = vmax.f32 %v618, 0.0
      %v669 = vmax.f32 %v623, 0.0
      %v670 = vmax.f32 %v628, 0.0
      %v671 = vmax.f32 %v633, 0.0
      %v672 = vmax.f32 %v638, 0.0
      %v673 = vmin.f32 %v641, 6.0
      %v674 = vmin.f32 %v642, 6.0
      %v675 = vmin.f32 %v643, 6.0
      %v676 = vmin.f32 %v644, 6.0
      %v677 = vmin.f32 %v645, 6.0
      %v678 = vmin.f32 %v646, 6.0
      %v679 = vmin.f32 %v647, 6.0
      %v680 = vmin.f32 %v648, 6.0
      %v681 = vmin.f32 %v649, 6.0
      %v682 = vmin.f32 %v650, 6.0
      %v683 = vmin.f32 %v651, 6.0
      %v684 = vmin.f32 %v652, 6.0
      %v685 = vmin.f32 %v653, 6.0
      %v686 = vmin.f32 %v654, 6.0
      %v687 = vmin.f32 %v655, 6.0
      %v688 = vmin.f32 %v656, 6.0
      %v689 = vmin.f32 %v657, 6.0
      %v690 = vmin.f32 %v658, 6.0
      %v691 = vmin.f32 %v659, 6.0
      %v692 = vmin.f32 %v660, 6.0
      %v693 = vmin.f32 %v661, 6.0
      %v694 = vmin.f32 %v662, 6.0
      %v695 = vmin.f32 %v663, 6.0
      %v696 = vmin.f32 %v664, 6.0
      %v697 = vmin.f32 %v665, 6.0
      %v698 = vmin.f32 %v666, 6.0
      %v699 = vmin.f32 %v667, 6.0
      %v700 = vmin.f32 %v668, 6.0
      %v701 = vmin.f32 %v669, 6.0
      %v702 = vmin.f32 %v670, 6.0
      %v703 = vmin.f32 %v671, 6.0
      %v704 = vmin.f32 %v672, 6.0
      %s705 = scalar_lea.vmem [#allocation2], 24
      %vm706 = vcmask 261120
      %707 = vst.msk [vmem:[%s705 + $0x1] sm:$0xff] %vm706, %v673
      %708 = vst.msk [vmem:[%s705 + $0x9] sm:$0xff] %vm706, %v674
      %709 = vst.msk [vmem:[%s705 + $0x19] sm:$0xff] %vm706, %v675
      %710 = vst.msk [vmem:[%s705 + $0x21] sm:$0xff] %vm706, %v676
      %711 = vst.msk [vmem:[%s705 + $0x31] sm:$0xff] %vm706, %v677
      %712 = vst.msk [vmem:[%s705 + $0x39] sm:$0xff] %vm706, %v678
      %713 = vst.msk [vmem:[%s705 + $0x49] sm:$0xff] %vm706, %v679
      %714 = vst.msk [vmem:[%s705 + $0x51] sm:$0xff] %vm706, %v680
      %715 = vst.msk [vmem:[%s705 + $0x61] sm:$0xff] %vm706, %v681
      %716 = vst.msk [vmem:[%s705 + $0x69] sm:$0xff] %vm706, %v682
      %717 = vst.msk [vmem:[%s705 + $0x79] sm:$0xff] %vm706, %v683
      %718 = vst.msk [vmem:[%s705 + $0x81] sm:$0xff] %vm706, %v684
      %719 = vst.msk [vmem:[%s705 + $0x91] sm:$0xff] %vm706, %v685
      %720 = vst.msk [vmem:[%s705 + $0x99] sm:$0xff] %vm706, %v686
      %721 = vst.msk [vmem:[%s705 + $0xa9] sm:$0xff] %vm706, %v687
      %722 = vst.msk [vmem:[%s705 + $0xb1] sm:$0xff] %vm706, %v688
      %723 = vst.msk [vmem:[%s705 + $0xc1] sm:$0xff] %vm706, %v689
      %724 = vst.msk [vmem:[%s705 + $0xc9] sm:$0xff] %vm706, %v690
      %725 = vst.msk [vmem:[%s705 + $0xd9] sm:$0xff] %vm706, %v691
      %726 = vst.msk [vmem:[%s705 + $0xe1] sm:$0xff] %vm706, %v692
      %727 = vst.msk [vmem:[%s705 + $0xf1] sm:$0xff] %vm706, %v693
      %728 = vst.msk [vmem:[%s705 + $0xf9] sm:$0xff] %vm706, %v694
      %729 = vst.msk [vmem:[%s705 + $0x109] sm:$0xff] %vm706, %v695
      %730 = vst.msk [vmem:[%s705 + $0x111] sm:$0xff] %vm706, %v696
      %731 = vst.msk [vmem:[%s705 + $0x121] sm:$0xff] %vm706, %v697
      %732 = vst.msk [vmem:[%s705 + $0x129] sm:$0xff] %vm706, %v698
      %733 = vst.msk [vmem:[%s705 + $0x139] sm:$0xff] %vm706, %v699
      %734 = vst.msk [vmem:[%s705 + $0x141] sm:$0xff] %vm706, %v700
      %735 = vst.msk [vmem:[%s705 + $0x151] sm:$0xff] %vm706, %v701
      %736 = vst.msk [vmem:[%s705 + $0x159] sm:$0xff] %vm706, %v702
      %737 = vst.msk [vmem:[%s705 + $0x169] sm:$0xff] %vm706, %v703
      %738 = vst.msk [vmem:[%s705 + $0x171] sm:$0xff] %vm706, %v704
      %739 = vst.msk [vmem:[#allocation2] sm:$0xff] %vm706, 0.0
      %740 = vst.msk [vmem:[#allocation2 + $0x8] sm:$0xff] %vm706, 0.0
      %vm741 = vcmask 254976
      %742 = vst.msk [vmem:[#allocation2 + $0x10] sm:$0x3] %vm741, 0.0
      %s743 = scalar_lea.vmem [#allocation2], 408
      %744 = vst.msk [vmem:[%s743] sm:$0xff] %vm706, 0.0
      %745 = vst.msk [vmem:[%s743 + $0x8] sm:$0xff] %vm706, 0.0
      %746 = vst.msk [vmem:[%s743 + $0x10] sm:$0x3] %vm741, 0.0
      %vm747 = vcmask 253952
      %748 = vst.msk [vmem:[#allocation2] sm:$0x1] %vm747, 0.0
      %749 = vst.msk [vmem:[#allocation2 + $0x18] sm:$0x1] %vm747, 0.0
      %750 = vst.msk [vmem:[#allocation2 + $0x30] sm:$0x1] %vm747, 0.0
      %751 = vst.msk [vmem:[#allocation2 + $0x48] sm:$0x1] %vm747, 0.0
      %752 = vst.msk [vmem:[#allocation2 + $0x60] sm:$0x1] %vm747, 0.0
      %753 = vst.msk [vmem:[#allocation2 + $0x78] sm:$0x1] %vm747, 0.0
      %754 = vst.msk [vmem:[#allocation2 + $0x90] sm:$0x1] %vm747, 0.0
      %755 = vst.msk [vmem:[#allocation2 + $0xa8] sm:$0x1] %vm747, 0.0
      %756 = vst.msk [vmem:[#allocation2 + $0xc0] sm:$0x1] %vm747, 0.0
      %757 = vst.msk [vmem:[#allocation2 + $0xd8] sm:$0x1] %vm747, 0.0
      %758 = vst.msk [vmem:[#allocation2 + $0xf0] sm:$0x1] %vm747, 0.0
      %759 = vst.msk [vmem:[#allocation2 + $0x108] sm:$0x1] %vm747, 0.0
      %760 = vst.msk [vmem:[#allocation2 + $0x120] sm:$0x1] %vm747, 0.0
      %761 = vst.msk [vmem:[#allocation2 + $0x138] sm:$0x1] %vm747, 0.0
      %762 = vst.msk [vmem:[#allocation2 + $0x150] sm:$0x1] %vm747, 0.0
      %763 = vst.msk [vmem:[#allocation2 + $0x168] sm:$0x1] %vm747, 0.0
      %764 = vst.msk [vmem:[#allocation2 + $0x180] sm:$0x1] %vm747, 0.0
      %765 = vst.msk [vmem:[#allocation2 + $0x198] sm:$0x1] %vm747, 0.0
      %766 = vst.msk [vmem:[#allocation2 + $0x11] sm:$0x1] %vm747, 0.0
      %767 = vst.msk [vmem:[#allocation2 + $0x29] sm:$0x1] %vm747, 0.0
      %768 = vst.msk [vmem:[#allocation2 + $0x41] sm:$0x1] %vm747, 0.0
      %769 = vst.msk [vmem:[#allocation2 + $0x59] sm:$0x1] %vm747, 0.0
      %770 = vst.msk [vmem:[#allocation2 + $0x71] sm:$0x1] %vm747, 0.0
      %771 = vst.msk [vmem:[#allocation2 + $0x89] sm:$0x1] %vm747, 0.0
      %772 = vst.msk [vmem:[#allocation2 + $0xa1] sm:$0x1] %vm747, 0.0
      %773 = vst.msk [vmem:[#allocation2 + $0xb9] sm:$0x1] %vm747, 0.0
      %774 = vst.msk [vmem:[#allocation2 + $0xd1] sm:$0x1] %vm747, 0.0
      %775 = vst.msk [vmem:[#allocation2 + $0xe9] sm:$0x1] %vm747, 0.0
      %776 = vst.msk [vmem:[#allocation2 + $0x101] sm:$0x1] %vm747, 0.0
      %777 = vst.msk [vmem:[#allocation2 + $0x119] sm:$0x1] %vm747, 0.0
      %778 = vst.msk [vmem:[#allocation2 + $0x131] sm:$0x1] %vm747, 0.0
      %779 = vst.msk [vmem:[#allocation2 + $0x149] sm:$0x1] %vm747, 0.0
      %780 = vst.msk [vmem:[#allocation2 + $0x161] sm:$0x1] %vm747, 0.0
      %781 = vst.msk [vmem:[#allocation2 + $0x179] sm:$0x1] %vm747, 0.0
      %782 = vst.msk [vmem:[#allocation2 + $0x191] sm:$0x1] %vm747, 0.0
      %783 = vst.msk [vmem:[#allocation2 + $0x1a9] sm:$0x1] %vm747, 0.0
      %v784 = vld [vmem:[%s3] sm:$0x7]
      %v785 = vld [vmem:[%s3 + $0x4] sm:$0x7]
      %v786 = vld [vmem:[%s3 + $0x8] sm:$0x7]
      %v787 = vld [vmem:[%s4] sm:$0x1]
      %v788 = vld [vmem:[#allocation2] sm:$0xff]
      %v789 = vld [vmem:[#allocation2 + $0x8] sm:$0xff]
      %v790 = vld [vmem:[#allocation2 + $0x18] sm:$0xff]
      %v791 = vld [vmem:[#allocation2 + $0x20] sm:$0xff]
      %v792 = vld [vmem:[#allocation2 + $0x30] sm:$0xff]
      %v793 = vld [vmem:[#allocation2 + $0x38] sm:$0xff]
      %v794 = vld [vmem:[#allocation2 + $0x48] sm:$0xff]
      %v795 = vld [vmem:[#allocation2 + $0x50] sm:$0xff]
      %v796 = vld [vmem:[#allocation2 + $0x60] sm:$0xff]
      %v797 = vld [vmem:[#allocation2 + $0x68] sm:$0xff]
      %v798 = vld [vmem:[#allocation2 + $0x78] sm:$0xff]
      %v799 = vld [vmem:[#allocation2 + $0x80] sm:$0xff]
      %v800 = vld [vmem:[#allocation2 + $0x90] sm:$0xff]
      %v801 = vld [vmem:[#allocation2 + $0x98] sm:$0xff]
      %v802 = vld [vmem:[#allocation2 + $0xa8] sm:$0xff]
      %v803 = vld [vmem:[#allocation2 + $0xb0] sm:$0xff]
      %v804 = vld [vmem:[#allocation2 + $0xc0] sm:$0xff]
      %v805 = vld [vmem:[#allocation2 + $0xc8] sm:$0xff]
      %v806 = vld [vmem:[#allocation2 + $0xd8] sm:$0xff]
      %v807 = vld [vmem:[#allocation2 + $0xe0] sm:$0xff]
      %v808 = vld [vmem:[#allocation2 + $0xf0] sm:$0xff]
      %v809 = vld [vmem:[#allocation2 + $0xf8] sm:$0xff]
      %v810 = vld [vmem:[#allocation2 + $0x108] sm:$0xff]
      %v811 = vld [vmem:[#allocation2 + $0x110] sm:$0xff]
      %v812 = vld [vmem:[#allocation2 + $0x120] sm:$0xff]
      %v813 = vld [vmem:[#allocation2 + $0x128] sm:$0xff]
      %v814 = vld [vmem:[#allocation2 + $0x138] sm:$0xff]
      %v815 = vld [vmem:[#allocation2 + $0x140] sm:$0xff]
      %v816 = vld [vmem:[#allocation2 + $0x150] sm:$0xff]
      %v817 = vld [vmem:[#allocation2 + $0x158] sm:$0xff]
      %v818 = vld [vmem:[#allocation2 + $0x168] sm:$0xff]
      %v819 = vld [vmem:[#allocation2 + $0x170] sm:$0xff]
      %v820 = vlaneseq
      %v821 = vshrl.u32 %v820, 7
      %v822 = vsub.s32 0, %v821
      %v823 = vrot.slane %v784, %v822
      %v824 = vmul.f32 %v788, %v823
      %v825 = vmul.f32 %v789, %v823
      %v826 = vmul.f32 %v790, %v823
      %v827 = vmul.f32 %v791, %v823
      %v828 = vmul.f32 %v792, %v823
      %v829 = vmul.f32 %v793, %v823
      %v830 = vmul.f32 %v794, %v823
      %v831 = vmul.f32 %v795, %v823
      %v832 = vmul.f32 %v796, %v823
      %v833 = vmul.f32 %v797, %v823
      %v834 = vmul.f32 %v798, %v823
      %v835 = vmul.f32 %v799, %v823
      %v836 = vmul.f32 %v800, %v823
      %v837 = vmul.f32 %v801, %v823
      %v838 = vmul.f32 %v802, %v823
      %v839 = vmul.f32 %v803, %v823
      %v840 = vmul.f32 %v804, %v823
      %v841 = vmul.f32 %v805, %v823
      %v842 = vmul.f32 %v806, %v823
      %v843 = vmul.f32 %v807, %v823
      %v844 = vmul.f32 %v808, %v823
      %v845 = vmul.f32 %v809, %v823
      %v846 = vmul.f32 %v810, %v823
      %v847 = vmul.f32 %v811, %v823
      %v848 = vmul.f32 %v812, %v823
      %v849 = vmul.f32 %v813, %v823
      %v850 = vmul.f32 %v814, %v823
      %v851 = vmul.f32 %v815, %v823
      %v852 = vmul.f32 %v816, %v823
      %v853 = vmul.f32 %v817, %v823
      %v854 = vmul.f32 %v818, %v823
      %v855 = vmul.f32 %v819, %v823
      %v856 = vld [vmem:[#allocation2 + $0x1] sm:$0xff]
      %v857 = vld [vmem:[#allocation2 + $0x9] sm:$0xff]
      %v858 = vld [vmem:[#allocation2 + $0x19] sm:$0xff]
      %v859 = vld [vmem:[#allocation2 + $0x21] sm:$0xff]
      %v860 = vld [vmem:[#allocation2 + $0x31] sm:$0xff]
      %v861 = vld [vmem:[#allocation2 + $0x39] sm:$0xff]
      %v862 = vld [vmem:[#allocation2 + $0x49] sm:$0xff]
      %v863 = vld [vmem:[#allocation2 + $0x51] sm:$0xff]
      %v864 = vld [vmem:[#allocation2 + $0x61] sm:$0xff]
      %v865 = vld [vmem:[#allocation2 + $0x69] sm:$0xff]
      %v866 = vld [vmem:[#allocation2 + $0x79] sm:$0xff]
      %v867 = vld [vmem:[#allocation2 + $0x81] sm:$0xff]
      %v868 = vld [vmem:[#allocation2 + $0x91] sm:$0xff]
      %v869 = vld [vmem:[#allocation2 + $0x99] sm:$0xff]
      %v870 = vld [vmem:[#allocation2 + $0xa9] sm:$0xff]
      %v871 = vld [vmem:[#allocation2 + $0xb1] sm:$0xff]
      %v872 = vld [vmem:[#allocation2 + $0xc1] sm:$0xff]
      %v873 = vld [vmem:[#allocation2 + $0xc9] sm:$0xff]
      %v874 = vld [vmem:[#allocation2 + $0xd9] sm:$0xff]
      %v875 = vld [vmem:[#allocation2 + $0xe1] sm:$0xff]
      %v876 = vld [vmem:[#allocation2 + $0xf1] sm:$0xff]
      %v877 = vld [vmem:[#allocation2 + $0xf9] sm:$0xff]
      %v878 = vld [vmem:[#allocation2 + $0x109] sm:$0xff]
      %v879 = vld [vmem:[#allocation2 + $0x111] sm:$0xff]
      %v880 = vld [vmem:[#allocation2 + $0x121] sm:$0xff]
      %v881 = vld [vmem:[#allocation2 + $0x129] sm:$0xff]
      %v882 = vld [vmem:[#allocation2 + $0x139] sm:$0xff]
      %v883 = vld [vmem:[#allocation2 + $0x141] sm:$0xff]
      %v884 = vld [vmem:[#allocation2 + $0x151] sm:$0xff]
      %v885 = vld [vmem:[#allocation2 + $0x159] sm:$0xff]
      %v886 = vld [vmem:[#allocation2 + $0x169] sm:$0xff]
      %v887 = vld [vmem:[#allocation2 + $0x171] sm:$0xff]
      %v888 = vlaneseq
      %v889 = vshrl.u32 %v888, 7
      %v890 = vsub.s32 1, %v889
      %v891 = vrot.slane %v784, %v890
      %v892 = vmul.f32 %v856, %v891
      %v893 = vmul.f32 %v857, %v891
      %v894 = vmul.f32 %v858, %v891
      %v895 = vmul.f32 %v859, %v891
      %v896 = vmul.f32 %v860, %v891
      %v897 = vmul.f32 %v861, %v891
      %v898 = vmul.f32 %v862, %v891
      %v899 = vmul.f32 %v863, %v891
      %v900 = vmul.f32 %v864, %v891
      %v901 = vmul.f32 %v865, %v891
      %v902 = vmul.f32 %v866, %v891
      %v903 = vmul.f32 %v867, %v891
      %v904 = vmul.f32 %v868, %v891
      %v905 = vmul.f32 %v869, %v891
      %v906 = vmul.f32 %v870, %v891
      %v907 = vmul.f32 %v871, %v891
      %v908 = vmul.f32 %v872, %v891
      %v909 = vmul.f32 %v873, %v891
      %v910 = vmul.f32 %v874, %v891
      %v911 = vmul.f32 %v875, %v891
      %v912 = vmul.f32 %v876, %v891
      %v913 = vmul.f32 %v877, %v891
      %v914 = vmul.f32 %v878, %v891
      %v915 = vmul.f32 %v879, %v891
      %v916 = vmul.f32 %v880, %v891
      %v917 = vmul.f32 %v881, %v891
      %v918 = vmul.f32 %v882, %v891
      %v919 = vmul.f32 %v883, %v891
      %v920 = vmul.f32 %v884, %v891
      %v921 = vmul.f32 %v885, %v891
      %v922 = vmul.f32 %v886, %v891
      %v923 = vmul.f32 %v887, %v891
      %v924 = vadd.f32 %v824, %v892
      %v925 = vadd.f32 %v825, %v893
      %v926 = vadd.f32 %v826, %v894
      %v927 = vadd.f32 %v827, %v895
      %v928 = vadd.f32 %v828, %v896
      %v929 = vadd.f32 %v829, %v897
      %v930 = vadd.f32 %v830, %v898
      %v931 = vadd.f32 %v831, %v899
      %v932 = vadd.f32 %v832, %v900
      %v933 = vadd.f32 %v833, %v901
      %v934 = vadd.f32 %v834, %v902
      %v935 = vadd.f32 %v835, %v903
      %v936 = vadd.f32 %v836, %v904
      %v937 = vadd.f32 %v837, %v905
      %v938 = vadd.f32 %v838, %v906
      %v939 = vadd.f32 %v839, %v907
      %v940 = vadd.f32 %v840, %v908
      %v941 = vadd.f32 %v841, %v909
      %v942 = vadd.f32 %v842, %v910
      %v943 = vadd.f32 %v843, %v911
      %v944 = vadd.f32 %v844, %v912
      %v945 = vadd.f32 %v845, %v913
      %v946 = vadd.f32 %v846, %v914
      %v947 = vadd.f32 %v847, %v915
      %v948 = vadd.f32 %v848, %v916
      %v949 = vadd.f32 %v849, %v917
      %v950 = vadd.f32 %v850, %v918
      %v951 = vadd.f32 %v851, %v919
      %v952 = vadd.f32 %v852, %v920
      %v953 = vadd.f32 %v853, %v921
      %v954 = vadd.f32 %v854, %v922
      %v955 = vadd.f32 %v855, %v923
      %v956 = vld [vmem:[#allocation2 + $0x2] sm:$0xff]
      %v957 = vld [vmem:[#allocation2 + $0xa] sm:$0xff]
      %v958 = vld [vmem:[#allocation2 + $0x1a] sm:$0xff]
      %v959 = vld [vmem:[#allocation2 + $0x22] sm:$0xff]
      %v960 = vld [vmem:[#allocation2 + $0x32] sm:$0xff]
      %v961 = vld [vmem:[#allocation2 + $0x3a] sm:$0xff]
      %v962 = vld [vmem:[#allocation2 + $0x4a] sm:$0xff]
      %v963 = vld [vmem:[#allocation2 + $0x52] sm:$0xff]
      %v964 = vld [vmem:[#allocation2 + $0x62] sm:$0xff]
      %v965 = vld [vmem:[#allocation2 + $0x6a] sm:$0xff]
      %v966 = vld [vmem:[#allocation2 + $0x7a] sm:$0xff]
      %v967 = vld [vmem:[#allocation2 + $0x82] sm:$0xff]
      %v968 = vld [vmem:[#allocation2 + $0x92] sm:$0xff]
      %v969 = vld [vmem:[#allocation2 + $0x9a] sm:$0xff]
      %v970 = vld [vmem:[#allocation2 + $0xaa] sm:$0xff]
      %v971 = vld [vmem:[#allocation2 + $0xb2] sm:$0xff]
      %v972 = vld [vmem:[#allocation2 + $0xc2] sm:$0xff]
      %v973 = vld [vmem:[#allocation2 + $0xca] sm:$0xff]
      %v974 = vld [vmem:[#allocation2 + $0xda] sm:$0xff]
      %v975 = vld [vmem:[#allocation2 + $0xe2] sm:$0xff]
      %v976 = vld [vmem:[#allocation2 + $0xf2] sm:$0xff]
      %v977 = vld [vmem:[#allocation2 + $0xfa] sm:$0xff]
      %v978 = vld [vmem:[#allocation2 + $0x10a] sm:$0xff]
      %v979 = vld [vmem:[#allocation2 + $0x112] sm:$0xff]
      %v980 = vld [vmem:[#allocation2 + $0x122] sm:$0xff]
      %v981 = vld [vmem:[#allocation2 + $0x12a] sm:$0xff]
      %v982 = vld [vmem:[#allocation2 + $0x13a] sm:$0xff]
      %v983 = vld [vmem:[#allocation2 + $0x142] sm:$0xff]
      %v984 = vld [vmem:[#allocation2 + $0x152] sm:$0xff]
      %v985 = vld [vmem:[#allocation2 + $0x15a] sm:$0xff]
      %v986 = vld [vmem:[#allocation2 + $0x16a] sm:$0xff]
      %v987 = vld [vmem:[#allocation2 + $0x172] sm:$0xff]
      %v988 = vlaneseq
      %v989 = vshrl.u32 %v988, 7
      %v990 = vsub.s32 2, %v989
      %v991 = vrot.slane %v784, %v990
      %v992 = vmul.f32 %v956, %v991
      %v993 = vmul.f32 %v957, %v991
      %v994 = vmul.f32 %v958, %v991
      %v995 = vmul.f32 %v959, %v991
      %v996 = vmul.f32 %v960, %v991
      %v997 = vmul.f32 %v961, %v991
      %v998 = vmul.f32 %v962, %v991
      %v999 = vmul.f32 %v963, %v991
      %v1000 = vmul.f32 %v964, %v991
      %v1001 = vmul.f32 %v965, %v991
      %v1002 = vmul.f32 %v966, %v991
      %v1003 = vmul.f32 %v967, %v991
      %v1004 = vmul.f32 %v968, %v991
      %v1005 = vmul.f32 %v969, %v991
      %v1006 = vmul.f32 %v970, %v991
      %v1007 = vmul.f32 %v971, %v991
      %v1008 = vmul.f32 %v972, %v991
      %v1009 = vmul.f32 %v973, %v991
      %v1010 = vmul.f32 %v974, %v991
      %v1011 = vmul.f32 %v975, %v991
      %v1012 = vmul.f32 %v976, %v991
      %v1013 = vmul.f32 %v977, %v991
      %v1014 = vmul.f32 %v978, %v991
      %v1015 = vmul.f32 %v979, %v991
      %v1016 = vmul.f32 %v980, %v991
      %v1017 = vmul.f32 %v981, %v991
      %v1018 = vmul.f32 %v982, %v991
      %v1019 = vmul.f32 %v983, %v991
      %v1020 = vmul.f32 %v984, %v991
      %v1021 = vmul.f32 %v985, %v991
      %v1022 = vmul.f32 %v986, %v991
      %v1023 = vmul.f32 %v987, %v991
      %v1024 = vadd.f32 %v924, %v992
      %v1025 = vadd.f32 %v925, %v993
      %v1026 = vadd.f32 %v926, %v994
      %v1027 = vadd.f32 %v927, %v995
      %v1028 = vadd.f32 %v928, %v996
      %v1029 = vadd.f32 %v929, %v997
      %v1030 = vadd.f32 %v930, %v998
      %v1031 = vadd.f32 %v931, %v999
      %v1032 = vadd.f32 %v932, %v1000
      %v1033 = vadd.f32 %v933, %v1001
      %v1034 = vadd.f32 %v934, %v1002
      %v1035 = vadd.f32 %v935, %v1003
      %v1036 = vadd.f32 %v936, %v1004
      %v1037 = vadd.f32 %v937, %v1005
      %v1038 = vadd.f32 %v938, %v1006
      %v1039 = vadd.f32 %v939, %v1007
      %v1040 = vadd.f32 %v940, %v1008
      %v1041 = vadd.f32 %v941, %v1009
      %v1042 = vadd.f32 %v942, %v1010
      %v1043 = vadd.f32 %v943, %v1011
      %v1044 = vadd.f32 %v944, %v1012
      %v1045 = vadd.f32 %v945, %v1013
      %v1046 = vadd.f32 %v946, %v1014
      %v1047 = vadd.f32 %v947, %v1015
      %v1048 = vadd.f32 %v948, %v1016
      %v1049 = vadd.f32 %v949, %v1017
      %v1050 = vadd.f32 %v950, %v1018
      %v1051 = vadd.f32 %v951, %v1019
      %v1052 = vadd.f32 %v952, %v1020
      %v1053 = vadd.f32 %v953, %v1021
      %v1054 = vadd.f32 %v954, %v1022
      %v1055 = vadd.f32 %v955, %v1023
      %v1056 = vld [vmem:[%s705] sm:$0xff]
      %v1057 = vld [vmem:[%s705 + $0x8] sm:$0xff]
      %v1058 = vld [vmem:[%s705 + $0x18] sm:$0xff]
      %v1059 = vld [vmem:[%s705 + $0x20] sm:$0xff]
      %v1060 = vld [vmem:[%s705 + $0x30] sm:$0xff]
      %v1061 = vld [vmem:[%s705 + $0x38] sm:$0xff]
      %v1062 = vld [vmem:[%s705 + $0x48] sm:$0xff]
      %v1063 = vld [vmem:[%s705 + $0x50] sm:$0xff]
      %v1064 = vld [vmem:[%s705 + $0x60] sm:$0xff]
      %v1065 = vld [vmem:[%s705 + $0x68] sm:$0xff]
      %v1066 = vld [vmem:[%s705 + $0x78] sm:$0xff]
      %v1067 = vld [vmem:[%s705 + $0x80] sm:$0xff]
      %v1068 = vld [vmem:[%s705 + $0x90] sm:$0xff]
      %v1069 = vld [vmem:[%s705 + $0x98] sm:$0xff]
      %v1070 = vld [vmem:[%s705 + $0xa8] sm:$0xff]
      %v1071 = vld [vmem:[%s705 + $0xb0] sm:$0xff]
      %v1072 = vld [vmem:[%s705 + $0xc0] sm:$0xff]
      %v1073 = vld [vmem:[%s705 + $0xc8] sm:$0xff]
      %v1074 = vld [vmem:[%s705 + $0xd8] sm:$0xff]
      %v1075 = vld [vmem:[%s705 + $0xe0] sm:$0xff]
      %v1076 = vld [vmem:[%s705 + $0xf0] sm:$0xff]
      %v1077 = vld [vmem:[%s705 + $0xf8] sm:$0xff]
      %v1078 = vld [vmem:[%s705 + $0x108] sm:$0xff]
      %v1079 = vld [vmem:[%s705 + $0x110] sm:$0xff]
      %v1080 = vld [vmem:[%s705 + $0x120] sm:$0xff]
      %v1081 = vld [vmem:[%s705 + $0x128] sm:$0xff]
      %v1082 = vld [vmem:[%s705 + $0x138] sm:$0xff]
      %v1083 = vld [vmem:[%s705 + $0x140] sm:$0xff]
      %v1084 = vld [vmem:[%s705 + $0x150] sm:$0xff]
      %v1085 = vld [vmem:[%s705 + $0x158] sm:$0xff]
      %v1086 = vld [vmem:[%s705 + $0x168] sm:$0xff]
      %v1087 = vld [vmem:[%s705 + $0x170] sm:$0xff]
      %v1088 = vlaneseq
      %v1089 = vshrl.u32 %v1088, 7
      %v1090 = vsub.s32 0, %v1089
      %v1091 = vrot.slane %v785, %v1090
      %v1092 = vmul.f32 %v1056, %v1091
      %v1093 = vmul.f32 %v1057, %v1091
      %v1094 = vmul.f32 %v1058, %v1091
      %v1095 = vmul.f32 %v1059, %v1091
      %v1096 = vmul.f32 %v1060, %v1091
      %v1097 = vmul.f32 %v1061, %v1091
      %v1098 = vmul.f32 %v1062, %v1091
      %v1099 = vmul.f32 %v1063, %v1091
      %v1100 = vmul.f32 %v1064, %v1091
      %v1101 = vmul.f32 %v1065, %v1091
      %v1102 = vmul.f32 %v1066, %v1091
      %v1103 = vmul.f32 %v1067, %v1091
      %v1104 = vmul.f32 %v1068, %v1091
      %v1105 = vmul.f32 %v1069, %v1091
      %v1106 = vmul.f32 %v1070, %v1091
      %v1107 = vmul.f32 %v1071, %v1091
      %v1108 = vmul.f32 %v1072, %v1091
      %v1109 = vmul.f32 %v1073, %v1091
      %v1110 = vmul.f32 %v1074, %v1091
      %v1111 = vmul.f32 %v1075, %v1091
      %v1112 = vmul.f32 %v1076, %v1091
      %v1113 = vmul.f32 %v1077, %v1091
      %v1114 = vmul.f32 %v1078, %v1091
      %v1115 = vmul.f32 %v1079, %v1091
      %v1116 = vmul.f32 %v1080, %v1091
      %v1117 = vmul.f32 %v1081, %v1091
      %v1118 = vmul.f32 %v1082, %v1091
      %v1119 = vmul.f32 %v1083, %v1091
      %v1120 = vmul.f32 %v1084, %v1091
      %v1121 = vmul.f32 %v1085, %v1091
      %v1122 = vmul.f32 %v1086, %v1091
      %v1123 = vmul.f32 %v1087, %v1091
      %v1124 = vadd.f32 %v1024, %v1092
      %v1125 = vadd.f32 %v1025, %v1093
      %v1126 = vadd.f32 %v1026, %v1094
      %v1127 = vadd.f32 %v1027, %v1095
      %v1128 = vadd.f32 %v1028, %v1096
      %v1129 = vadd.f32 %v1029, %v1097
      %v1130 = vadd.f32 %v1030, %v1098
      %v1131 = vadd.f32 %v1031, %v1099
      %v1132 = vadd.f32 %v1032, %v1100
      %v1133 = vadd.f32 %v1033, %v1101
      %v1134 = vadd.f32 %v1034, %v1102
      %v1135 = vadd.f32 %v1035, %v1103
      %v1136 = vadd.f32 %v1036, %v1104
      %v1137 = vadd.f32 %v1037, %v1105
      %v1138 = vadd.f32 %v1038, %v1106
      %v1139 = vadd.f32 %v1039, %v1107
      %v1140 = vadd.f32 %v1040, %v1108
      %v1141 = vadd.f32 %v1041, %v1109
      %v1142 = vadd.f32 %v1042, %v1110
      %v1143 = vadd.f32 %v1043, %v1111
      %v1144 = vadd.f32 %v1044, %v1112
      %v1145 = vadd.f32 %v1045, %v1113
      %v1146 = vadd.f32 %v1046, %v1114
      %v1147 = vadd.f32 %v1047, %v1115
      %v1148 = vadd.f32 %v1048, %v1116
      %v1149 = vadd.f32 %v1049, %v1117
      %v1150 = vadd.f32 %v1050, %v1118
      %v1151 = vadd.f32 %v1051, %v1119
      %v1152 = vadd.f32 %v1052, %v1120
      %v1153 = vadd.f32 %v1053, %v1121
      %v1154 = vadd.f32 %v1054, %v1122
      %v1155 = vadd.f32 %v1055, %v1123
      %v1156 = vld [vmem:[%s705 + $0x1] sm:$0xff]
      %v1157 = vld [vmem:[%s705 + $0x9] sm:$0xff]
      %v1158 = vld [vmem:[%s705 + $0x19] sm:$0xff]
      %v1159 = vld [vmem:[%s705 + $0x21] sm:$0xff]
      %v1160 = vld [vmem:[%s705 + $0x31] sm:$0xff]
      %v1161 = vld [vmem:[%s705 + $0x39] sm:$0xff]
      %v1162 = vld [vmem:[%s705 + $0x49] sm:$0xff]
      %v1163 = vld [vmem:[%s705 + $0x51] sm:$0xff]
      %v1164 = vld [vmem:[%s705 + $0x61] sm:$0xff]
      %v1165 = vld [vmem:[%s705 + $0x69] sm:$0xff]
      %v1166 = vld [vmem:[%s705 + $0x79] sm:$0xff]
      %v1167 = vld [vmem:[%s705 + $0x81] sm:$0xff]
      %v1168 = vld [vmem:[%s705 + $0x91] sm:$0xff]
      %v1169 = vld [vmem:[%s705 + $0x99] sm:$0xff]
      %v1170 = vld [vmem:[%s705 + $0xa9] sm:$0xff]
      %v1171 = vld [vmem:[%s705 + $0xb1] sm:$0xff]
      %v1172 = vld [vmem:[%s705 + $0xc1] sm:$0xff]
      %v1173 = vld [vmem:[%s705 + $0xc9] sm:$0xff]
      %v1174 = vld [vmem:[%s705 + $0xd9] sm:$0xff]
      %v1175 = vld [vmem:[%s705 + $0xe1] sm:$0xff]
      %v1176 = vld [vmem:[%s705 + $0xf1] sm:$0xff]
      %v1177 = vld [vmem:[%s705 + $0xf9] sm:$0xff]
      %v1178 = vld [vmem:[%s705 + $0x109] sm:$0xff]
      %v1179 = vld [vmem:[%s705 + $0x111] sm:$0xff]
      %v1180 = vld [vmem:[%s705 + $0x121] sm:$0xff]
      %v1181 = vld [vmem:[%s705 + $0x129] sm:$0xff]
      %v1182 = vld [vmem:[%s705 + $0x139] sm:$0xff]
      %v1183 = vld [vmem:[%s705 + $0x141] sm:$0xff]
      %v1184 = vld [vmem:[%s705 + $0x151] sm:$0xff]
      %v1185 = vld [vmem:[%s705 + $0x159] sm:$0xff]
      %v1186 = vld [vmem:[%s705 + $0x169] sm:$0xff]
      %v1187 = vld [vmem:[%s705 + $0x171] sm:$0xff]
      %v1188 = vlaneseq
      %v1189 = vshrl.u32 %v1188, 7
      %v1190 = vsub.s32 1, %v1189
      %v1191 = vrot.slane %v785, %v1190
      %v1192 = vmul.f32 %v1156, %v1191
      %v1193 = vmul.f32 %v1157, %v1191
      %v1194 = vmul.f32 %v1158, %v1191
      %v1195 = vmul.f32 %v1159, %v1191
      %v1196 = vmul.f32 %v1160, %v1191
      %v1197 = vmul.f32 %v1161, %v1191
      %v1198 = vmul.f32 %v1162, %v1191
      %v1199 = vmul.f32 %v1163, %v1191
      %v1200 = vmul.f32 %v1164, %v1191
      %v1201 = vmul.f32 %v1165, %v1191
      %v1202 = vmul.f32 %v1166, %v1191
      %v1203 = vmul.f32 %v1167, %v1191
      %v1204 = vmul.f32 %v1168, %v1191
      %v1205 = vmul.f32 %v1169, %v1191
      %v1206 = vmul.f32 %v1170, %v1191
      %v1207 = vmul.f32 %v1171, %v1191
      %v1208 = vmul.f32 %v1172, %v1191
      %v1209 = vmul.f32 %v1173, %v1191
      %v1210 = vmul.f32 %v1174, %v1191
      %v1211 = vmul.f32 %v1175, %v1191
      %v1212 = vmul.f32 %v1176, %v1191
      %v1213 = vmul.f32 %v1177, %v1191
      %v1214 = vmul.f32 %v1178, %v1191
      %v1215 = vmul.f32 %v1179, %v1191
      %v1216 = vmul.f32 %v1180, %v1191
      %v1217 = vmul.f32 %v1181, %v1191
      %v1218 = vmul.f32 %v1182, %v1191
      %v1219 = vmul.f32 %v1183, %v1191
      %v1220 = vmul.f32 %v1184, %v1191
      %v1221 = vmul.f32 %v1185, %v1191
      %v1222 = vmul.f32 %v1186, %v1191
      %v1223 = vmul.f32 %v1187, %v1191
      %v1224 = vadd.f32 %v1124, %v1192
      %v1225 = vadd.f32 %v1125, %v1193
      %v1226 = vadd.f32 %v1126, %v1194
      %v1227 = vadd.f32 %v1127, %v1195
      %v1228 = vadd.f32 %v1128, %v1196
      %v1229 = vadd.f32 %v1129, %v1197
      %v1230 = vadd.f32 %v1130, %v1198
      %v1231 = vadd.f32 %v1131, %v1199
      %v1232 = vadd.f32 %v1132, %v1200
      %v1233 = vadd.f32 %v1133, %v1201
      %v1234 = vadd.f32 %v1134, %v1202
      %v1235 = vadd.f32 %v1135, %v1203
      %v1236 = vadd.f32 %v1136, %v1204
      %v1237 = vadd.f32 %v1137, %v1205
      %v1238 = vadd.f32 %v1138, %v1206
      %v1239 = vadd.f32 %v1139, %v1207
      %v1240 = vadd.f32 %v1140, %v1208
      %v1241 = vadd.f32 %v1141, %v1209
      %v1242 = vadd.f32 %v1142, %v1210
      %v1243 = vadd.f32 %v1143, %v1211
      %v1244 = vadd.f32 %v1144, %v1212
      %v1245 = vadd.f32 %v1145, %v1213
      %v1246 = vadd.f32 %v1146, %v1214
      %v1247 = vadd.f32 %v1147, %v1215
      %v1248 = vadd.f32 %v1148, %v1216
      %v1249 = vadd.f32 %v1149, %v1217
      %v1250 = vadd.f32 %v1150, %v1218
      %v1251 = vadd.f32 %v1151, %v1219
      %v1252 = vadd.f32 %v1152, %v1220
      %v1253 = vadd.f32 %v1153, %v1221
      %v1254 = vadd.f32 %v1154, %v1222
      %v1255 = vadd.f32 %v1155, %v1223
      %v1256 = vld [vmem:[%s705 + $0x2] sm:$0xff]
      %v1257 = vld [vmem:[%s705 + $0xa] sm:$0xff]
      %v1258 = vld [vmem:[%s705 + $0x1a] sm:$0xff]
      %v1259 = vld [vmem:[%s705 + $0x22] sm:$0xff]
      %v1260 = vld [vmem:[%s705 + $0x32] sm:$0xff]
      %v1261 = vld [vmem:[%s705 + $0x3a] sm:$0xff]
      %v1262 = vld [vmem:[%s705 + $0x4a] sm:$0xff]
      %v1263 = vld [vmem:[%s705 + $0x52] sm:$0xff]
      %v1264 = vld [vmem:[%s705 + $0x62] sm:$0xff]
      %v1265 = vld [vmem:[%s705 + $0x6a] sm:$0xff]
      %v1266 = vld [vmem:[%s705 + $0x7a] sm:$0xff]
      %v1267 = vld [vmem:[%s705 + $0x82] sm:$0xff]
      %v1268 = vld [vmem:[%s705 + $0x92] sm:$0xff]
      %v1269 = vld [vmem:[%s705 + $0x9a] sm:$0xff]
      %v1270 = vld [vmem:[%s705 + $0xaa] sm:$0xff]
      %v1271 = vld [vmem:[%s705 + $0xb2] sm:$0xff]
      %v1272 = vld [vmem:[%s705 + $0xc2] sm:$0xff]
      %v1273 = vld [vmem:[%s705 + $0xca] sm:$0xff]
      %v1274 = vld [vmem:[%s705 + $0xda] sm:$0xff]
      %v1275 = vld [vmem:[%s705 + $0xe2] sm:$0xff]
      %v1276 = vld [vmem:[%s705 + $0xf2] sm:$0xff]
      %v1277 = vld [vmem:[%s705 + $0xfa] sm:$0xff]
      %v1278 = vld [vmem:[%s705 + $0x10a] sm:$0xff]
      %v1279 = vld [vmem:[%s705 + $0x112] sm:$0xff]
      %v1280 = vld [vmem:[%s705 + $0x122] sm:$0xff]
      %v1281 = vld [vmem:[%s705 + $0x12a] sm:$0xff]
      %v1282 = vld [vmem:[%s705 + $0x13a] sm:$0xff]
      %v1283 = vld [vmem:[%s705 + $0x142] sm:$0xff]
      %v1284 = vld [vmem:[%s705 + $0x152] sm:$0xff]
      %v1285 = vld [vmem:[%s705 + $0x15a] sm:$0xff]
      %v1286 = vld [vmem:[%s705 + $0x16a] sm:$0xff]
      %v1287 = vld [vmem:[%s705 + $0x172] sm:$0xff]
      %v1288 = vlaneseq
      %v1289 = vshrl.u32 %v1288, 7
      %v1290 = vsub.s32 2, %v1289
      %v1291 = vrot.slane %v785, %v1290
      %v1292 = vmul.f32 %v1256, %v1291
      %v1293 = vmul.f32 %v1257, %v1291
      %v1294 = vmul.f32 %v1258, %v1291
      %v1295 = vmul.f32 %v1259, %v1291
      %v1296 = vmul.f32 %v1260, %v1291
      %v1297 = vmul.f32 %v1261, %v1291
      %v1298 = vmul.f32 %v1262, %v1291
      %v1299 = vmul.f32 %v1263, %v1291
      %v1300 = vmul.f32 %v1264, %v1291
      %v1301 = vmul.f32 %v1265, %v1291
      %v1302 = vmul.f32 %v1266, %v1291
      %v1303 = vmul.f32 %v1267, %v1291
      %v1304 = vmul.f32 %v1268, %v1291
      %v1305 = vmul.f32 %v1269, %v1291
      %v1306 = vmul.f32 %v1270, %v1291
      %v1307 = vmul.f32 %v1271, %v1291
      %v1308 = vmul.f32 %v1272, %v1291
      %v1309 = vmul.f32 %v1273, %v1291
      %v1310 = vmul.f32 %v1274, %v1291
      %v1311 = vmul.f32 %v1275, %v1291
      %v1312 = vmul.f32 %v1276, %v1291
      %v1313 = vmul.f32 %v1277, %v1291
      %v1314 = vmul.f32 %v1278, %v1291
      %v1315 = vmul.f32 %v1279, %v1291
      %v1316 = vmul.f32 %v1280, %v1291
      %v1317 = vmul.f32 %v1281, %v1291
      %v1318 = vmul.f32 %v1282, %v1291
      %v1319 = vmul.f32 %v1283, %v1291
      %v1320 = vmul.f32 %v1284, %v1291
      %v1321 = vmul.f32 %v1285, %v1291
      %v1322 = vmul.f32 %v1286, %v1291
      %v1323 = vmul.f32 %v1287, %v1291
      %v1324 = vadd.f32 %v1224, %v1292
      %v1325 = vadd.f32 %v1225, %v1293
      %v1326 = vadd.f32 %v1226, %v1294
      %v1327 = vadd.f32 %v1227, %v1295
      %v1328 = vadd.f32 %v1228, %v1296
      %v1329 = vadd.f32 %v1229, %v1297
      %v1330 = vadd.f32 %v1230, %v1298
      %v1331 = vadd.f32 %v1231, %v1299
      %v1332 = vadd.f32 %v1232, %v1300
      %v1333 = vadd.f32 %v1233, %v1301
      %v1334 = vadd.f32 %v1234, %v1302
      %v1335 = vadd.f32 %v1235, %v1303
      %v1336 = vadd.f32 %v1236, %v1304
      %v1337 = vadd.f32 %v1237, %v1305
      %v1338 = vadd.f32 %v1238, %v1306
      %v1339 = vadd.f32 %v1239, %v1307
      %v1340 = vadd.f32 %v1240, %v1308
      %v1341 = vadd.f32 %v1241, %v1309
      %v1342 = vadd.f32 %v1242, %v1310
      %v1343 = vadd.f32 %v1243, %v1311
      %v1344 = vadd.f32 %v1244, %v1312
      %v1345 = vadd.f32 %v1245, %v1313
      %v1346 = vadd.f32 %v1246, %v1314
      %v1347 = vadd.f32 %v1247, %v1315
      %v1348 = vadd.f32 %v1248, %v1316
      %v1349 = vadd.f32 %v1249, %v1317
      %v1350 = vadd.f32 %v1250, %v1318
      %v1351 = vadd.f32 %v1251, %v1319
      %v1352 = vadd.f32 %v1252, %v1320
      %v1353 = vadd.f32 %v1253, %v1321
      %v1354 = vadd.f32 %v1254, %v1322
      %v1355 = vadd.f32 %v1255, %v1323
      %s1356 = scalar_lea.vmem [#allocation2], 48
      %v1357 = vld [vmem:[%s1356] sm:$0xff]
      %v1358 = vld [vmem:[%s1356 + $0x8] sm:$0xff]
      %v1359 = vld [vmem:[%s1356 + $0x18] sm:$0xff]
      %v1360 = vld [vmem:[%s1356 + $0x20] sm:$0xff]
      %v1361 = vld [vmem:[%s1356 + $0x30] sm:$0xff]
      %v1362 = vld [vmem:[%s1356 + $0x38] sm:$0xff]
      %v1363 = vld [vmem:[%s1356 + $0x48] sm:$0xff]
      %v1364 = vld [vmem:[%s1356 + $0x50] sm:$0xff]
      %v1365 = vld [vmem:[%s1356 + $0x60] sm:$0xff]
      %v1366 = vld [vmem:[%s1356 + $0x68] sm:$0xff]
      %v1367 = vld [vmem:[%s1356 + $0x78] sm:$0xff]
      %v1368 = vld [vmem:[%s1356 + $0x80] sm:$0xff]
      %v1369 = vld [vmem:[%s1356 + $0x90] sm:$0xff]
      %v1370 = vld [vmem:[%s1356 + $0x98] sm:$0xff]
      %v1371 = vld [vmem:[%s1356 + $0xa8] sm:$0xff]
      %v1372 = vld [vmem:[%s1356 + $0xb0] sm:$0xff]
      %v1373 = vld [vmem:[%s1356 + $0xc0] sm:$0xff]
      %v1374 = vld [vmem:[%s1356 + $0xc8] sm:$0xff]
      %v1375 = vld [vmem:[%s1356 + $0xd8] sm:$0xff]
      %v1376 = vld [vmem:[%s1356 + $0xe0] sm:$0xff]
      %v1377 = vld [vmem:[%s1356 + $0xf0] sm:$0xff]
      %v1378 = vld [vmem:[%s1356 + $0xf8] sm:$0xff]
      %v1379 = vld [vmem:[%s1356 + $0x108] sm:$0xff]
      %v1380 = vld [vmem:[%s1356 + $0x110] sm:$0xff]
      %v1381 = vld [vmem:[%s1356 + $0x120] sm:$0xff]
      %v1382 = vld [vmem:[%s1356 + $0x128] sm:$0xff]
      %v1383 = vld [vmem:[%s1356 + $0x138] sm:$0xff]
      %v1384 = vld [vmem:[%s1356 + $0x140] sm:$0xff]
      %v1385 = vld [vmem:[%s1356 + $0x150] sm:$0xff]
      %v1386 = vld [vmem:[%s1356 + $0x158] sm:$0xff]
      %v1387 = vld [vmem:[%s1356 + $0x168] sm:$0xff]
      %v1388 = vld [vmem:[%s1356 + $0x170] sm:$0xff]
      %v1389 = vlaneseq
      %v1390 = vshrl.u32 %v1389, 7
      %v1391 = vsub.s32 0, %v1390
      %v1392 = vrot.slane %v786, %v1391
      %v1393 = vmul.f32 %v1357, %v1392
      %v1394 = vmul.f32 %v1358, %v1392
      %v1395 = vmul.f32 %v1359, %v1392
      %v1396 = vmul.f32 %v1360, %v1392
      %v1397 = vmul.f32 %v1361, %v1392
      %v1398 = vmul.f32 %v1362, %v1392
      %v1399 = vmul.f32 %v1363, %v1392
      %v1400 = vmul.f32 %v1364, %v1392
      %v1401 = vmul.f32 %v1365, %v1392
      %v1402 = vmul.f32 %v1366, %v1392
      %v1403 = vmul.f32 %v1367, %v1392
      %v1404 = vmul.f32 %v1368, %v1392
      %v1405 = vmul.f32 %v1369, %v1392
      %v1406 = vmul.f32 %v1370, %v1392
      %v1407 = vmul.f32 %v1371, %v1392
      %v1408 = vmul.f32 %v1372, %v1392
      %v1409 = vmul.f32 %v1373, %v1392
      %v1410 = vmul.f32 %v1374, %v1392
      %v1411 = vmul.f32 %v1375, %v1392
      %v1412 = vmul.f32 %v1376, %v1392
      %v1413 = vmul.f32 %v1377, %v1392
      %v1414 = vmul.f32 %v1378, %v1392
      %v1415 = vmul.f32 %v1379, %v1392
      %v1416 = vmul.f32 %v1380, %v1392
      %v1417 = vmul.f32 %v1381, %v1392
      %v1418 = vmul.f32 %v1382, %v1392
      %v1419 = vmul.f32 %v1383, %v1392
      %v1420 = vmul.f32 %v1384, %v1392
      %v1421 = vmul.f32 %v1385, %v1392
      %v1422 = vmul.f32 %v1386, %v1392
      %v1423 = vmul.f32 %v1387, %v1392
      %v1424 = vmul.f32 %v1388, %v1392
      %v1425 = vadd.f32 %v1324, %v1393
      %v1426 = vadd.f32 %v1325, %v1394
      %v1427 = vadd.f32 %v1326, %v1395
      %v1428 = vadd.f32 %v1327, %v1396
      %v1429 = vadd.f32 %v1328, %v1397
      %v1430 = vadd.f32 %v1329, %v1398
      %v1431 = vadd.f32 %v1330, %v1399
      %v1432 = vadd.f32 %v1331, %v1400
      %v1433 = vadd.f32 %v1332, %v1401
      %v1434 = vadd.f32 %v1333, %v1402
      %v1435 = vadd.f32 %v1334, %v1403
      %v1436 = vadd.f32 %v1335, %v1404
      %v1437 = vadd.f32 %v1336, %v1405
      %v1438 = vadd.f32 %v1337, %v1406
      %v1439 = vadd.f32 %v1338, %v1407
      %v1440 = vadd.f32 %v1339, %v1408
      %v1441 = vadd.f32 %v1340, %v1409
      %v1442 = vadd.f32 %v1341, %v1410
      %v1443 = vadd.f32 %v1342, %v1411
      %v1444 = vadd.f32 %v1343, %v1412
      %v1445 = vadd.f32 %v1344, %v1413
      %v1446 = vadd.f32 %v1345, %v1414
      %v1447 = vadd.f32 %v1346, %v1415
      %v1448 = vadd.f32 %v1347, %v1416
      %v1449 = vadd.f32 %v1348, %v1417
      %v1450 = vadd.f32 %v1349, %v1418
      %v1451 = vadd.f32 %v1350, %v1419
      %v1452 = vadd.f32 %v1351, %v1420
      %v1453 = vadd.f32 %v1352, %v1421
      %v1454 = vadd.f32 %v1353, %v1422
      %v1455 = vadd.f32 %v1354, %v1423
      %v1456 = vadd.f32 %v1355, %v1424
      %v1457 = vld [vmem:[%s1356 + $0x1] sm:$0xff]
      %v1458 = vld [vmem:[%s1356 + $0x9] sm:$0xff]
      %v1459 = vld [vmem:[%s1356 + $0x19] sm:$0xff]
      %v1460 = vld [vmem:[%s1356 + $0x21] sm:$0xff]
      %v1461 = vld [vmem:[%s1356 + $0x31] sm:$0xff]
      %v1462 = vld [vmem:[%s1356 + $0x39] sm:$0xff]
      %v1463 = vld [vmem:[%s1356 + $0x49] sm:$0xff]
      %v1464 = vld [vmem:[%s1356 + $0x51] sm:$0xff]
      %v1465 = vld [vmem:[%s1356 + $0x61] sm:$0xff]
      %v1466 = vld [vmem:[%s1356 + $0x69] sm:$0xff]
      %v1467 = vld [vmem:[%s1356 + $0x79] sm:$0xff]
      %v1468 = vld [vmem:[%s1356 + $0x81] sm:$0xff]
      %v1469 = vld [vmem:[%s1356 + $0x91] sm:$0xff]
      %v1470 = vld [vmem:[%s1356 + $0x99] sm:$0xff]
      %v1471 = vld [vmem:[%s1356 + $0xa9] sm:$0xff]
      %v1472 = vld [vmem:[%s1356 + $0xb1] sm:$0xff]
      %v1473 = vld [vmem:[%s1356 + $0xc1] sm:$0xff]
      %v1474 = vld [vmem:[%s1356 + $0xc9] sm:$0xff]
      %v1475 = vld [vmem:[%s1356 + $0xd9] sm:$0xff]
      %v1476 = vld [vmem:[%s1356 + $0xe1] sm:$0xff]
      %v1477 = vld [vmem:[%s1356 + $0xf1] sm:$0xff]
      %v1478 = vld [vmem:[%s1356 + $0xf9] sm:$0xff]
      %v1479 = vld [vmem:[%s1356 + $0x109] sm:$0xff]
      %v1480 = vld [vmem:[%s1356 + $0x111] sm:$0xff]
      %v1481 = vld [vmem:[%s1356 + $0x121] sm:$0xff]
      %v1482 = vld [vmem:[%s1356 + $0x129] sm:$0xff]
      %v1483 = vld [vmem:[%s1356 + $0x139] sm:$0xff]
      %v1484 = vld [vmem:[%s1356 + $0x141] sm:$0xff]
      %v1485 = vld [vmem:[%s1356 + $0x151] sm:$0xff]
      %v1486 = vld [vmem:[%s1356 + $0x159] sm:$0xff]
      %v1487 = vld [vmem:[%s1356 + $0x169] sm:$0xff]
      %v1488 = vld [vmem:[%s1356 + $0x171] sm:$0xff]
      %v1489 = vlaneseq
      %v1490 = vshrl.u32 %v1489, 7
      %v1491 = vsub.s32 1, %v1490
      %v1492 = vrot.slane %v786, %v1491
      %v1493 = vmul.f32 %v1457, %v1492
      %v1494 = vmul.f32 %v1458, %v1492
      %v1495 = vmul.f32 %v1459, %v1492
      %v1496 = vmul.f32 %v1460, %v1492
      %v1497 = vmul.f32 %v1461, %v1492
      %v1498 = vmul.f32 %v1462, %v1492
      %v1499 = vmul.f32 %v1463, %v1492
      %v1500 = vmul.f32 %v1464, %v1492
      %v1501 = vmul.f32 %v1465, %v1492
      %v1502 = vmul.f32 %v1466, %v1492
      %v1503 = vmul.f32 %v1467, %v1492
      %v1504 = vmul.f32 %v1468, %v1492
      %v1505 = vmul.f32 %v1469, %v1492
      %v1506 = vmul.f32 %v1470, %v1492
      %v1507 = vmul.f32 %v1471, %v1492
      %v1508 = vmul.f32 %v1472, %v1492
      %v1509 = vmul.f32 %v1473, %v1492
      %v1510 = vmul.f32 %v1474, %v1492
      %v1511 = vmul.f32 %v1475, %v1492
      %v1512 = vmul.f32 %v1476, %v1492
      %v1513 = vmul.f32 %v1477, %v1492
      %v1514 = vmul.f32 %v1478, %v1492
      %v1515 = vmul.f32 %v1479, %v1492
      %v1516 = vmul.f32 %v1480, %v1492
      %v1517 = vmul.f32 %v1481, %v1492
      %v1518 = vmul.f32 %v1482, %v1492
      %v1519 = vmul.f32 %v1483, %v1492
      %v1520 = vmul.f32 %v1484, %v1492
      %v1521 = vmul.f32 %v1485, %v1492
      %v1522 = vmul.f32 %v1486, %v1492
      %v1523 = vmul.f32 %v1487, %v1492
      %v1524 = vmul.f32 %v1488, %v1492
      %v1525 = vadd.f32 %v1425, %v1493
      %v1526 = vadd.f32 %v1426, %v1494
      %v1527 = vadd.f32 %v1427, %v1495
      %v1528 = vadd.f32 %v1428, %v1496
      %v1529 = vadd.f32 %v1429, %v1497
      %v1530 = vadd.f32 %v1430, %v1498
      %v1531 = vadd.f32 %v1431, %v1499
      %v1532 = vadd.f32 %v1432, %v1500
      %v1533 = vadd.f32 %v1433, %v1501
      %v1534 = vadd.f32 %v1434, %v1502
      %v1535 = vadd.f32 %v1435, %v1503
      %v1536 = vadd.f32 %v1436, %v1504
      %v1537 = vadd.f32 %v1437, %v1505
      %v1538 = vadd.f32 %v1438, %v1506
      %v1539 = vadd.f32 %v1439, %v1507
      %v1540 = vadd.f32 %v1440, %v1508
      %v1541 = vadd.f32 %v1441, %v1509
      %v1542 = vadd.f32 %v1442, %v1510
      %v1543 = vadd.f32 %v1443, %v1511
      %v1544 = vadd.f32 %v1444, %v1512
      %v1545 = vadd.f32 %v1445, %v1513
      %v1546 = vadd.f32 %v1446, %v1514
      %v1547 = vadd.f32 %v1447, %v1515
      %v1548 = vadd.f32 %v1448, %v1516
      %v1549 = vadd.f32 %v1449, %v1517
      %v1550 = vadd.f32 %v1450, %v1518
      %v1551 = vadd.f32 %v1451, %v1519
      %v1552 = vadd.f32 %v1452, %v1520
      %v1553 = vadd.f32 %v1453, %v1521
      %v1554 = vadd.f32 %v1454, %v1522
      %v1555 = vadd.f32 %v1455, %v1523
      %v1556 = vadd.f32 %v1456, %v1524
      %v1557 = vld [vmem:[%s1356 + $0x2] sm:$0xff]
      %v1558 = vld [vmem:[%s1356 + $0xa] sm:$0xff]
      %v1559 = vld [vmem:[%s1356 + $0x1a] sm:$0xff]
      %v1560 = vld [vmem:[%s1356 + $0x22] sm:$0xff]
      %v1561 = vld [vmem:[%s1356 + $0x32] sm:$0xff]
      %v1562 = vld [vmem:[%s1356 + $0x3a] sm:$0xff]
      %v1563 = vld [vmem:[%s1356 + $0x4a] sm:$0xff]
      %v1564 = vld [vmem:[%s1356 + $0x52] sm:$0xff]
      %v1565 = vld [vmem:[%s1356 + $0x62] sm:$0xff]
      %v1566 = vld [vmem:[%s1356 + $0x6a] sm:$0xff]
      %v1567 = vld [vmem:[%s1356 + $0x7a] sm:$0xff]
      %v1568 = vld [vmem:[%s1356 + $0x82] sm:$0xff]
      %v1569 = vld [vmem:[%s1356 + $0x92] sm:$0xff]
      %v1570 = vld [vmem:[%s1356 + $0x9a] sm:$0xff]
      %v1571 = vld [vmem:[%s1356 + $0xaa] sm:$0xff]
      %v1572 = vld [vmem:[%s1356 + $0xb2] sm:$0xff]
      %v1573 = vld [vmem:[%s1356 + $0xc2] sm:$0xff]
      %v1574 = vld [vmem:[%s1356 + $0xca] sm:$0xff]
      %v1575 = vld [vmem:[%s1356 + $0xda] sm:$0xff]
      %v1576 = vld [vmem:[%s1356 + $0xe2] sm:$0xff]
      %v1577 = vld [vmem:[%s1356 + $0xf2] sm:$0xff]
      %v1578 = vld [vmem:[%s1356 + $0xfa] sm:$0xff]
      %v1579 = vld [vmem:[%s1356 + $0x10a] sm:$0xff]
      %v1580 = vld [vmem:[%s1356 + $0x112] sm:$0xff]
      %v1581 = vld [vmem:[%s1356 + $0x122] sm:$0xff]
      %v1582 = vld [vmem:[%s1356 + $0x12a] sm:$0xff]
      %v1583 = vld [vmem:[%s1356 + $0x13a] sm:$0xff]
      %v1584 = vld [vmem:[%s1356 + $0x142] sm:$0xff]
      %v1585 = vld [vmem:[%s1356 + $0x152] sm:$0xff]
      %v1586 = vld [vmem:[%s1356 + $0x15a] sm:$0xff]
      %v1587 = vld [vmem:[%s1356 + $0x16a] sm:$0xff]
      %v1588 = vld [vmem:[%s1356 + $0x172] sm:$0xff]
      %v1589 = vlaneseq
      %v1590 = vshrl.u32 %v1589, 7
      %v1591 = vsub.s32 2, %v1590
      %v1592 = vrot.slane %v786, %v1591
      %v1593 = vmul.f32 %v1557, %v1592
      %v1594 = vmul.f32 %v1558, %v1592
      %v1595 = vmul.f32 %v1559, %v1592
      %v1596 = vmul.f32 %v1560, %v1592
      %v1597 = vmul.f32 %v1561, %v1592
      %v1598 = vmul.f32 %v1562, %v1592
      %v1599 = vmul.f32 %v1563, %v1592
      %v1600 = vmul.f32 %v1564, %v1592
      %v1601 = vmul.f32 %v1565, %v1592
      %v1602 = vmul.f32 %v1566, %v1592
      %v1603 = vmul.f32 %v1567, %v1592
      %v1604 = vmul.f32 %v1568, %v1592
      %v1605 = vmul.f32 %v1569, %v1592
      %v1606 = vmul.f32 %v1570, %v1592
      %v1607 = vmul.f32 %v1571, %v1592
      %v1608 = vmul.f32 %v1572, %v1592
      %v1609 = vmul.f32 %v1573, %v1592
      %v1610 = vmul.f32 %v1574, %v1592
      %v1611 = vmul.f32 %v1575, %v1592
      %v1612 = vmul.f32 %v1576, %v1592
      %v1613 = vmul.f32 %v1577, %v1592
      %v1614 = vmul.f32 %v1578, %v1592
      %v1615 = vmul.f32 %v1579, %v1592
      %v1616 = vmul.f32 %v1580, %v1592
      %v1617 = vmul.f32 %v1581, %v1592
      %v1618 = vmul.f32 %v1582, %v1592
      %v1619 = vmul.f32 %v1583, %v1592
      %v1620 = vmul.f32 %v1584, %v1592
      %v1621 = vmul.f32 %v1585, %v1592
      %v1622 = vmul.f32 %v1586, %v1592
      %v1623 = vmul.f32 %v1587, %v1592
      %v1624 = vmul.f32 %v1588, %v1592
      %v1625 = vadd.f32 %v1525, %v1593
      %v1626 = vadd.f32 %v1526, %v1594
      %v1627 = vadd.f32 %v1527, %v1595
      %v1628 = vadd.f32 %v1528, %v1596
      %v1629 = vadd.f32 %v1529, %v1597
      %v1630 = vadd.f32 %v1530, %v1598
      %v1631 = vadd.f32 %v1531, %v1599
      %v1632 = vadd.f32 %v1532, %v1600
      %v1633 = vadd.f32 %v1533, %v1601
      %v1634 = vadd.f32 %v1534, %v1602
      %v1635 = vadd.f32 %v1535, %v1603
      %v1636 = vadd.f32 %v1536, %v1604
      %v1637 = vadd.f32 %v1537, %v1605
      %v1638 = vadd.f32 %v1538, %v1606
      %v1639 = vadd.f32 %v1539, %v1607
      %v1640 = vadd.f32 %v1540, %v1608
      %v1641 = vadd.f32 %v1541, %v1609
      %v1642 = vadd.f32 %v1542, %v1610
      %v1643 = vadd.f32 %v1543, %v1611
      %v1644 = vadd.f32 %v1544, %v1612
      %v1645 = vadd.f32 %v1545, %v1613
      %v1646 = vadd.f32 %v1546, %v1614
      %v1647 = vadd.f32 %v1547, %v1615
      %v1648 = vadd.f32 %v1548, %v1616
      %v1649 = vadd.f32 %v1549, %v1617
      %v1650 = vadd.f32 %v1550, %v1618
      %v1651 = vadd.f32 %v1551, %v1619
      %v1652 = vadd.f32 %v1552, %v1620
      %v1653 = vadd.f32 %v1553, %v1621
      %v1654 = vadd.f32 %v1554, %v1622
      %v1655 = vadd.f32 %v1555, %v1623
      %v1656 = vadd.f32 %v1556, %v1624
      %v1658 = vlaneseq
      %v1659 = vshrl.u32 %v1658, 7
      %v1660 = vsub.s32 0, %v1659
      %v1661 = vrot.slane %v787, %v1660
      %v1663 = vadd.f32 %v1625, %v1661
      %v1664 = vadd.f32 %v1626, %v1661
      %v1665 = vadd.f32 %v1627, %v1661
      %v1666 = vadd.f32 %v1628, %v1661
      %v1667 = vadd.f32 %v1629, %v1661
      %v1668 = vadd.f32 %v1630, %v1661
      %v1669 = vadd.f32 %v1631, %v1661
      %v1670 = vadd.f32 %v1632, %v1661
      %v1671 = vadd.f32 %v1633, %v1661
      %v1672 = vadd.f32 %v1634, %v1661
      %v1673 = vadd.f32 %v1635, %v1661
      %v1674 = vadd.f32 %v1636, %v1661
      %v1675 = vadd.f32 %v1637, %v1661
      %v1676 = vadd.f32 %v1638, %v1661
      %v1677 = vadd.f32 %v1639, %v1661
      %v1678 = vadd.f32 %v1640, %v1661
      %v1679 = vadd.f32 %v1641, %v1661
      %v1680 = vadd.f32 %v1642, %v1661
      %v1681 = vadd.f32 %v1643, %v1661
      %v1682 = vadd.f32 %v1644, %v1661
      %v1683 = vadd.f32 %v1645, %v1661
      %v1684 = vadd.f32 %v1646, %v1661
      %v1685 = vadd.f32 %v1647, %v1661
      %v1686 = vadd.f32 %v1648, %v1661
      %v1687 = vadd.f32 %v1649, %v1661
      %v1688 = vadd.f32 %v1650, %v1661
      %v1689 = vadd.f32 %v1651, %v1661
      %v1690 = vadd.f32 %v1652, %v1661
      %v1691 = vadd.f32 %v1653, %v1661
      %v1692 = vadd.f32 %v1654, %v1661
      %v1693 = vadd.f32 %v1655, %v1661
      %v1694 = vadd.f32 %v1656, %v1661
      %v1695 = vmax.f32 %v1663, 0.0
      %v1696 = vmax.f32 %v1664, 0.0
      %v1697 = vmax.f32 %v1665, 0.0
      %v1698 = vmax.f32 %v1666, 0.0
      %v1699 = vmax.f32 %v1667, 0.0
      %v1700 = vmax.f32 %v1668, 0.0
      %v1701 = vmax.f32 %v1669, 0.0
      %v1702 = vmax.f32 %v1670, 0.0
      %v1703 = vmax.f32 %v1671, 0.0
      %v1704 = vmax.f32 %v1672, 0.0
      %v1705 = vmax.f32 %v1673, 0.0
      %v1706 = vmax.f32 %v1674, 0.0
      %v1707 = vmax.f32 %v1675, 0.0
      %v1708 = vmax.f32 %v1676, 0.0
      %v1709 = vmax.f32 %v1677, 0.0
      %v1710 = vmax.f32 %v1678, 0.0
      %v1711 = vmax.f32 %v1679, 0.0
      %v1712 = vmax.f32 %v1680, 0.0
      %v1713 = vmax.f32 %v1681, 0.0
      %v1714 = vmax.f32 %v1682, 0.0
      %v1715 = vmax.f32 %v1683, 0.0
      %v1716 = vmax.f32 %v1684, 0.0
      %v1717 = vmax.f32 %v1685, 0.0
      %v1718 = vmax.f32 %v1686, 0.0
      %v1719 = vmax.f32 %v1687, 0.0
      %v1720 = vmax.f32 %v1688, 0.0
      %v1721 = vmax.f32 %v1689, 0.0
      %v1722 = vmax.f32 %v1690, 0.0
      %v1723 = vmax.f32 %v1691, 0.0
      %v1724 = vmax.f32 %v1692, 0.0
      %v1725 = vmax.f32 %v1693, 0.0
      %v1726 = vmax.f32 %v1694, 0.0
      %v1727 = vmin.f32 %v1695, 6.0
      %v1728 = vmin.f32 %v1696, 6.0
      %v1729 = vmin.f32 %v1697, 6.0
      %v1730 = vmin.f32 %v1698, 6.0
      %v1731 = vmin.f32 %v1699, 6.0
      %v1732 = vmin.f32 %v1700, 6.0
      %v1733 = vmin.f32 %v1701, 6.0
      %v1734 = vmin.f32 %v1702, 6.0
      %v1735 = vmin.f32 %v1703, 6.0
      %v1736 = vmin.f32 %v1704, 6.0
      %v1737 = vmin.f32 %v1705, 6.0
      %v1738 = vmin.f32 %v1706, 6.0
      %v1739 = vmin.f32 %v1707, 6.0
      %v1740 = vmin.f32 %v1708, 6.0
      %v1741 = vmin.f32 %v1709, 6.0
      %v1742 = vmin.f32 %v1710, 6.0
      %v1743 = vmin.f32 %v1711, 6.0
      %v1744 = vmin.f32 %v1712, 6.0
      %v1745 = vmin.f32 %v1713, 6.0
      %v1746 = vmin.f32 %v1714, 6.0
      %v1747 = vmin.f32 %v1715, 6.0
      %v1748 = vmin.f32 %v1716, 6.0
      %v1749 = vmin.f32 %v1717, 6.0
      %v1750 = vmin.f32 %v1718, 6.0
      %v1751 = vmin.f32 %v1719, 6.0
      %v1752 = vmin.f32 %v1720, 6.0
      %v1753 = vmin.f32 %v1721, 6.0
      %v1754 = vmin.f32 %v1722, 6.0
      %v1755 = vmin.f32 %v1723, 6.0
      %v1756 = vmin.f32 %v1724, 6.0
      %v1757 = vmin.f32 %v1725, 6.0
      %v1758 = vmin.f32 %v1726, 6.0
      %v1759 = vld [vmem:[%s5] sm:$0xff]
      %v1760 = vld [vmem:[%s5 + $0x8] sm:$0xff]
      %v1761 = vld [vmem:[%s5 + $0x10] sm:$0xff]
      %v1762 = vld [vmem:[%s5 + $0x18] sm:$0xff]
      %v1763 = vld [vmem:[%s6] sm:$0x1]
      %v1765 = vlaneseq
      %v1766 = vshrl.u32 %v1765, 7
      %v1767 = vsub.s32 0, %v1766
      %v1768 = vrot.slane %v1763, %v1767
      %v1771 = vsel %vm706, %v1727, 0
      %v1774 = vsel %vm706, %v1728, 0
      %v1777 = vsel %vm706, %v1729, 0
      %v1780 = vsel %vm706, %v1730, 0
      %v1783 = vsel %vm706, %v1731, 0
      %v1786 = vsel %vm706, %v1732, 0
      %v1789 = vsel %vm706, %v1733, 0
      %v1792 = vsel %vm706, %v1734, 0
      %v1795 = vsel %vm706, %v1735, 0
      %v1798 = vsel %vm706, %v1736, 0
      %v1801 = vsel %vm706, %v1737, 0
      %v1804 = vsel %vm706, %v1738, 0
      %v1807 = vsel %vm706, %v1739, 0
      %v1810 = vsel %vm706, %v1740, 0
      %v1813 = vsel %vm706, %v1741, 0
      %v1816 = vsel %vm706, %v1742, 0
      %v1819 = vsel %vm706, %v1743, 0
      %v1822 = vsel %vm706, %v1744, 0
      %v1825 = vsel %vm706, %v1745, 0
      %v1828 = vsel %vm706, %v1746, 0
      %v1831 = vsel %vm706, %v1747, 0
      %v1834 = vsel %vm706, %v1748, 0
      %v1837 = vsel %vm706, %v1749, 0
      %v1840 = vsel %vm706, %v1750, 0
      %v1843 = vsel %vm706, %v1751, 0
      %v1846 = vsel %vm706, %v1752, 0
      %v1849 = vsel %vm706, %v1753, 0
      %v1852 = vsel %vm706, %v1754, 0
      %v1855 = vsel %vm706, %v1755, 0
      %v1858 = vsel %vm706, %v1756, 0
      %v1861 = vsel %vm706, %v1757, 0
      %v1864 = vsel %vm706, %v1758, 0
      %1866 = vmatprep.subr.mxu0 0.0
      %1867 = vmatpush1.msra.mxu0 %v1759
      %1868 = vmatprep.subr.mxu0 0.0
      %1869 = vmatpush1.msra.mxu0 %v1760
      %1870 = vmatprep.subr.mxu0 0.0
      %1871 = vmatpush1.msra.mxu0 %v1761
      %1872 = vmatprep.subr.mxu0 0.0
      %1873 = vmatpush1.msra.mxu0 %v1762
      %1874 = vmatprep.subr.mxu0 0.0
      %1875 = vmatpush1.msra.mxu0 0.0
      %1876 = vmatprep.subr.mxu0 0.0
      %1877 = vmatpush1.msra.mxu0 0.0
      %1878 = vmatprep.subr.mxu0 0.0
      %1879 = vmatpush1.msra.mxu0 0.0
      %1880 = vmatprep.subr.mxu0 0.0
      %1881 = vmatpush1.msra.mxu0 0.0
      %1882 = vmatprep.subr.mxu0 0.0
      %1883 = vmatpush1.msra.mxu0 0.0
      %1884 = vmatprep.subr.mxu0 0.0
      %1885 = vmatpush1.msra.mxu0 0.0
      %1886 = vmatprep.subr.mxu0 0.0
      %1887 = vmatpush1.msra.mxu0 0.0
      %1888 = vmatprep.subr.mxu0 0.0
      %1889 = vmatpush1.msra.mxu0 0.0
      %1890 = vmatprep.subr.mxu0 0.0
      %1891 = vmatpush1.msra.mxu0 0.0
      %1892 = vmatprep.subr.mxu0 0.0
      %1893 = vmatpush1.msra.mxu0 0.0
      %1894 = vmatprep.subr.mxu0 0.0
      %1895 = vmatpush1.msra.mxu0 0.0
      %1896 = vmatprep.subr.mxu0 0.0
      %1897 = vmatpush1.msra.mxu0 0.0
      %1898 = vmatprep.subr.mxu0 0.0
      %1899 = vmatpush1.msra.mxu0 0.0
      %1900 = vmatprep.subr.mxu0 0.0
      %1901 = vmatpush1.msra.mxu0 0.0
      %1902 = vmatprep.subr.mxu0 0.0
      %1903 = vmatpush1.msra.mxu0 0.0
      %1904 = vmatprep.subr.mxu0 0.0
      %1905 = vmatpush1.msra.mxu0 0.0
      %1906 = vmatprep.subr.mxu0 0.0
      %1907 = vmatpush1.msra.mxu0 0.0
      %1908 = vmatprep.subr.mxu0 0.0
      %1909 = vmatpush1.msra.mxu0 0.0
      %1910 = vmatprep.subr.mxu0 0.0
      %1911 = vmatpush1.msra.mxu0 0.0
      %1912 = vmatprep.subr.mxu0 0.0
      %1913 = vmatpush1.msra.mxu0 0.0
      %1914 = vmatprep.subr.mxu0 0.0
      %1915 = vmatpush1.msra.mxu0 0.0
      %1916 = vmatprep.subr.mxu0 0.0
      %1917 = vmatpush1.msra.mxu0 0.0
      %1918 = vmatprep.subr.mxu0 0.0
      %1919 = vmatpush1.msra.mxu0 0.0
      %1920 = vmatprep.subr.mxu0 0.0
      %1921 = vmatpush1.msra.mxu0 0.0
      %1922 = vmatprep.subr.mxu0 0.0
      %1923 = vmatpush1.msra.mxu0 0.0
      %1924 = vmatprep.subr.mxu0 0.0
      %1925 = vmatpush1.msra.mxu0 0.0
      %1926 = vmatprep.subr.mxu0 0.0
      %1927 = vmatpush1.msra.mxu0 0.0
      %1928 = vmatprep.subr.mxu0 0.0
      %1929 = vmatpush1.msra.mxu0 0.0
      %1930 = vmatprep.mubr.f32.mxu0 0.0
      %1931 = vmatmul.mubr.f32.gmra.mrb[0].mxu0 %v1771
      %v1932 = vpop.f32.mrb[0].mxu0
      %v1933 = vadd.f32 %v1768, %v1932
      %v1934 = vpop.f32.mrb[0].mxu0
      %1935 = vmatprep.mubr.f32.mxu0 0.0
      %1936 = vmatmul.mubr.f32.gmra.mrb[0].mxu0 %v1774
      %v1937 = vpop.f32.mrb[0].mxu0
      %v1938 = vadd.f32 %v1768, %v1937
      %v1939 = vpop.f32.mrb[0].mxu0
      %1940 = vmatprep.mubr.f32.mxu0 0.0
      %1941 = vmatmul.mubr.f32.gmra.mrb[0].mxu0 %v1777
      %v1942 = vpop.f32.mrb[0].mxu0
      %v1943 = vadd.f32 %v1768, %v1942
      %v1944 = vpop.f32.mrb[0].mxu0
      %1945 = vmatprep.mubr.f32.mxu0 0.0
      %1946 = vmatmul.mubr.f32.gmra.mrb[0].mxu0 %v1780
      %v1947 = vpop.f32.mrb[0].mxu0
      %v1948 = vadd.f32 %v1768, %v1947
      %v1949 = vpop.f32.mrb[0].mxu0
      %1950 = vmatprep.mubr.f32.mxu0 0.0
      %1951 = vmatmul.mubr.f32.gmra.mrb[0].mxu0 %v1783
      %v1952 = vpop.f32.mrb[0].mxu0
      %v1953 = vadd.f32 %v1768, %v1952
      %v1954 = vpop.f32.mrb[0].mxu0
      %1955 = vmatprep.mubr.f32.mxu0 0.0
      %1956 = vmatmul.mubr.f32.gmra.mrb[0].mxu0 %v1786
      %v1957 = vpop.f32.mrb[0].mxu0
      %v1958 = vadd.f32 %v1768, %v1957
      %v1959 = vpop.f32.mrb[0].mxu0
      %1960 = vmatprep.mubr.f32.mxu0 0.0
      %1961 = vmatmul.mubr.f32.gmra.mrb[0].mxu0 %v1789
      %v1962 = vpop.f32.mrb[0].mxu0
      %v1963 = vadd.f32 %v1768, %v1962
      %v1964 = vpop.f32.mrb[0].mxu0
      %1965 = vmatprep.mubr.f32.mxu0 0.0
      %1966 = vmatmul.mubr.f32.gmra.mrb[0].mxu0 %v1792
      %v1967 = vpop.f32.mrb[0].mxu0
      %v1968 = vadd.f32 %v1768, %v1967
      %v1969 = vpop.f32.mrb[0].mxu0
      %1970 = vmatprep.mubr.f32.mxu0 0.0
      %1971 = vmatmul.mubr.f32.gmra.mrb[0].mxu0 %v1795
      %v1972 = vpop.f32.mrb[0].mxu0
      %v1973 = vadd.f32 %v1768, %v1972
      %v1974 = vpop.f32.mrb[0].mxu0
      %1975 = vmatprep.mubr.f32.mxu0 0.0
      %1976 = vmatmul.mubr.f32.gmra.mrb[0].mxu0 %v1798
      %v1977 = vpop.f32.mrb[0].mxu0
      %v1978 = vadd.f32 %v1768, %v1977
      %v1979 = vpop.f32.mrb[0].mxu0
      %1980 = vmatprep.mubr.f32.mxu0 0.0
      %1981 = vmatmul.mubr.f32.gmra.mrb[0].mxu0 %v1801
      %v1982 = vpop.f32.mrb[0].mxu0
      %v1983 = vadd.f32 %v1768, %v1982
      %v1984 = vpop.f32.mrb[0].mxu0
      %1985 = vmatprep.mubr.f32.mxu0 0.0
      %1986 = vmatmul.mubr.f32.gmra.mrb[0].mxu0 %v1804
      %v1987 = vpop.f32.mrb[0].mxu0
      %v1988 = vadd.f32 %v1768, %v1987
      %v1989 = vpop.f32.mrb[0].mxu0
      %1990 = vmatprep.mubr.f32.mxu0 0.0
      %1991 = vmatmul.mubr.f32.gmra.mrb[0].mxu0 %v1807
      %v1992 = vpop.f32.mrb[0].mxu0
      %v1993 = vadd.f32 %v1768, %v1992
      %v1994 = vpop.f32.mrb[0].mxu0
      %1995 = vmatprep.mubr.f32.mxu0 0.0
      %1996 = vmatmul.mubr.f32.gmra.mrb[0].mxu0 %v1810
      %v1997 = vpop.f32.mrb[0].mxu0
      %v1998 = vadd.f32 %v1768, %v1997
      %v1999 = vpop.f32.mrb[0].mxu0
      %2000 = vmatprep.mubr.f32.mxu0 0.0
      %2001 = vmatmul.mubr.f32.gmra.mrb[0].mxu0 %v1813
      %v2002 = vpop.f32.mrb[0].mxu0
      %v2003 = vadd.f32 %v1768, %v2002
      %v2004 = vpop.f32.mrb[0].mxu0
      %2005 = vmatprep.mubr.f32.mxu0 0.0
      %2006 = vmatmul.mubr.f32.gmra.mrb[0].mxu0 %v1816
      %v2007 = vpop.f32.mrb[0].mxu0
      %v2008 = vadd.f32 %v1768, %v2007
      %v2009 = vpop.f32.mrb[0].mxu0
      %2010 = vmatprep.mubr.f32.mxu0 0.0
      %2011 = vmatmul.mubr.f32.gmra.mrb[0].mxu0 %v1819
      %v2012 = vpop.f32.mrb[0].mxu0
      %v2013 = vadd.f32 %v1768, %v2012
      %v2014 = vpop.f32.mrb[0].mxu0
      %2015 = vmatprep.mubr.f32.mxu0 0.0
      %2016 = vmatmul.mubr.f32.gmra.mrb[0].mxu0 %v1822
      %v2017 = vpop.f32.mrb[0].mxu0
      %v2018 = vadd.f32 %v1768, %v2017
      %v2019 = vpop.f32.mrb[0].mxu0
      %2020 = vmatprep.mubr.f32.mxu0 0.0
      %2021 = vmatmul.mubr.f32.gmra.mrb[0].mxu0 %v1825
      %v2022 = vpop.f32.mrb[0].mxu0
      %v2023 = vadd.f32 %v1768, %v2022
      %v2024 = vpop.f32.mrb[0].mxu0
      %2025 = vmatprep.mubr.f32.mxu0 0.0
      %2026 = vmatmul.mubr.f32.gmra.mrb[0].mxu0 %v1828
      %v2027 = vpop.f32.mrb[0].mxu0
      %v2028 = vadd.f32 %v1768, %v2027
      %v2029 = vpop.f32.mrb[0].mxu0
      %2030 = vmatprep.mubr.f32.mxu0 0.0
      %2031 = vmatmul.mubr.f32.gmra.mrb[0].mxu0 %v1831
      %v2032 = vpop.f32.mrb[0].mxu0
      %v2033 = vadd.f32 %v1768, %v2032
      %v2034 = vpop.f32.mrb[0].mxu0
      %2035 = vmatprep.mubr.f32.mxu0 0.0
      %2036 = vmatmul.mubr.f32.gmra.mrb[0].mxu0 %v1834
      %v2037 = vpop.f32.mrb[0].mxu0
      %v2038 = vadd.f32 %v1768, %v2037
      %v2039 = vpop.f32.mrb[0].mxu0
      %2040 = vmatprep.mubr.f32.mxu0 0.0
      %2041 = vmatmul.mubr.f32.gmra.mrb[0].mxu0 %v1837
      %v2042 = vpop.f32.mrb[0].mxu0
      %v2043 = vadd.f32 %v1768, %v2042
      %v2044 = vpop.f32.mrb[0].mxu0
      %2045 = vmatprep.mubr.f32.mxu0 0.0
      %2046 = vmatmul.mubr.f32.gmra.mrb[0].mxu0 %v1840
      %v2047 = vpop.f32.mrb[0].mxu0
      %v2048 = vadd.f32 %v1768, %v2047
      %v2049 = vpop.f32.mrb[0].mxu0
      %2050 = vmatprep.mubr.f32.mxu0 0.0
      %2051 = vmatmul.mubr.f32.gmra.mrb[0].mxu0 %v1843
      %v2052 = vpop.f32.mrb[0].mxu0
      %v2053 = vadd.f32 %v1768, %v2052
      %v2054 = vpop.f32.mrb[0].mxu0
      %2055 = vmatprep.mubr.f32.mxu0 0.0
      %2056 = vmatmul.mubr.f32.gmra.mrb[0].mxu0 %v1846
      %v2057 = vpop.f32.mrb[0].mxu0
      %v2058 = vadd.f32 %v1768, %v2057
      %v2059 = vpop.f32.mrb[0].mxu0
      %2060 = vmatprep.mubr.f32.mxu0 0.0
      %2061 = vmatmul.mubr.f32.gmra.mrb[0].mxu0 %v1849
      %v2062 = vpop.f32.mrb[0].mxu0
      %v2063 = vadd.f32 %v1768, %v2062
      %v2064 = vpop.f32.mrb[0].mxu0
      %2065 = vmatprep.mubr.f32.mxu0 0.0
      %2066 = vmatmul.mubr.f32.gmra.mrb[0].mxu0 %v1852
      %v2067 = vpop.f32.mrb[0].mxu0
      %v2068 = vadd.f32 %v1768, %v2067
      %v2069 = vpop.f32.mrb[0].mxu0
      %2070 = vmatprep.mubr.f32.mxu0 0.0
      %2071 = vmatmul.mubr.f32.gmra.mrb[0].mxu0 %v1855
      %v2072 = vpop.f32.mrb[0].mxu0
      %v2073 = vadd.f32 %v1768, %v2072
      %v2074 = vpop.f32.mrb[0].mxu0
      %2075 = vmatprep.mubr.f32.mxu0 0.0
      %2076 = vmatmul.mubr.f32.gmra.mrb[0].mxu0 %v1858
      %v2077 = vpop.f32.mrb[0].mxu0
      %v2078 = vadd.f32 %v1768, %v2077
      %v2079 = vpop.f32.mrb[0].mxu0
      %2080 = vmatprep.mubr.f32.mxu0 0.0
      %2081 = vmatmul.mubr.f32.gmra.mrb[0].mxu0 %v1861
      %v2082 = vpop.f32.mrb[0].mxu0
      %v2083 = vadd.f32 %v1768, %v2082
      %v2084 = vpop.f32.mrb[0].mxu0
      %2085 = vmatprep.mubr.f32.mxu0 0.0
      %2086 = vmatmul.mubr.f32.gmra.mrb[0].mxu0 %v1864
      %v2087 = vpop.f32.mrb[0].mxu0
      %v2088 = vadd.f32 %v1768, %v2087
      %v2089 = vpop.f32.mrb[0].mxu0
      %2090 = vdwg.mxu0
      %v2091 = vld [vmem:[%s273] sm:$0xff]
      %v2092 = vld [vmem:[%s273 + $0x8] sm:$0xff]
      %v2093 = vld [vmem:[%s273 + $0x10] sm:$0xff]
      %v2094 = vld [vmem:[%s273 + $0x18] sm:$0xff]
      %v2095 = vld [vmem:[%s273 + $0x20] sm:$0xff]
      %v2096 = vld [vmem:[%s273 + $0x28] sm:$0xff]
      %v2097 = vld [vmem:[%s273 + $0x30] sm:$0xff]
      %v2098 = vld [vmem:[%s273 + $0x38] sm:$0xff]
      %v2099 = vld [vmem:[%s273 + $0x40] sm:$0xff]
      %v2100 = vld [vmem:[%s273 + $0x48] sm:$0xff]
      %v2101 = vld [vmem:[%s273 + $0x50] sm:$0xff]
      %v2102 = vld [vmem:[%s273 + $0x58] sm:$0xff]
      %v2103 = vld [vmem:[%s273 + $0x60] sm:$0xff]
      %v2104 = vld [vmem:[%s273 + $0x68] sm:$0xff]
      %v2105 = vld [vmem:[%s273 + $0x70] sm:$0xff]
      %v2106 = vld [vmem:[%s273 + $0x78] sm:$0xff]
      %v2107 = vld [vmem:[%s273 + $0x80] sm:$0xff]
      %v2108 = vld [vmem:[%s273 + $0x88] sm:$0xff]
      %v2109 = vld [vmem:[%s273 + $0x90] sm:$0xff]
      %v2110 = vld [vmem:[%s273 + $0x98] sm:$0xff]
      %v2111 = vld [vmem:[%s273 + $0xa0] sm:$0xff]
      %v2112 = vld [vmem:[%s273 + $0xa8] sm:$0xff]
      %v2113 = vld [vmem:[%s273 + $0xb0] sm:$0xff]
      %v2114 = vld [vmem:[%s273 + $0xb8] sm:$0xff]
      %v2115 = vld [vmem:[%s273 + $0xc0] sm:$0xff]
      %v2116 = vld [vmem:[%s273 + $0xc8] sm:$0xff]
      %v2117 = vld [vmem:[%s273 + $0xd0] sm:$0xff]
      %v2118 = vld [vmem:[%s273 + $0xd8] sm:$0xff]
      %v2119 = vld [vmem:[%s273 + $0xe0] sm:$0xff]
      %v2120 = vld [vmem:[%s273 + $0xe8] sm:$0xff]
      %v2121 = vld [vmem:[%s273 + $0xf0] sm:$0xff]
      %v2122 = vld [vmem:[%s273 + $0xf8] sm:$0xff]
      %v2123 = vadd.f32 %v1933, %v2091
      %v2124 = vadd.f32 %v1938, %v2092
      %v2125 = vadd.f32 %v1943, %v2093
      %v2126 = vadd.f32 %v1948, %v2094
      %v2127 = vadd.f32 %v1953, %v2095
      %v2128 = vadd.f32 %v1958, %v2096
      %v2129 = vadd.f32 %v1963, %v2097
      %v2130 = vadd.f32 %v1968, %v2098
      %v2131 = vadd.f32 %v1973, %v2099
      %v2132 = vadd.f32 %v1978, %v2100
      %v2133 = vadd.f32 %v1983, %v2101
      %v2134 = vadd.f32 %v1988, %v2102
      %v2135 = vadd.f32 %v1993, %v2103
      %v2136 = vadd.f32 %v1998, %v2104
      %v2137 = vadd.f32 %v2003, %v2105
      %v2138 = vadd.f32 %v2008, %v2106
      %v2139 = vadd.f32 %v2013, %v2107
      %v2140 = vadd.f32 %v2018, %v2108
      %v2141 = vadd.f32 %v2023, %v2109
      %v2142 = vadd.f32 %v2028, %v2110
      %v2143 = vadd.f32 %v2033, %v2111
      %v2144 = vadd.f32 %v2038, %v2112
      %v2145 = vadd.f32 %v2043, %v2113
      %v2146 = vadd.f32 %v2048, %v2114
      %v2147 = vadd.f32 %v2053, %v2115
      %v2148 = vadd.f32 %v2058, %v2116
      %v2149 = vadd.f32 %v2063, %v2117
      %v2150 = vadd.f32 %v2068, %v2118
      %v2151 = vadd.f32 %v2073, %v2119
      %v2152 = vadd.f32 %v2078, %v2120
      %v2153 = vadd.f32 %v2083, %v2121
      %v2154 = vadd.f32 %v2088, %v2122
      %2155 = vst.msk [vmem:[%s278] sm:$0xff] %vm319, %v2123
      %2156 = vst.msk [vmem:[%s278 + $0x8] sm:$0xff] %vm319, %v2124
      %2157 = vst.msk [vmem:[%s278 + $0x10] sm:$0xff] %vm319, %v2125
      %2158 = vst.msk [vmem:[%s278 + $0x18] sm:$0xff] %vm319, %v2126
      %2159 = vst.msk [vmem:[%s278 + $0x20] sm:$0xff] %vm319, %v2127
      %2160 = vst.msk [vmem:[%s278 + $0x28] sm:$0xff] %vm319, %v2128
      %2161 = vst.msk [vmem:[%s278 + $0x30] sm:$0xff] %vm319, %v2129
      %2162 = vst.msk [vmem:[%s278 + $0x38] sm:$0xff] %vm319, %v2130
      %2163 = vst.msk [vmem:[%s278 + $0x40] sm:$0xff] %vm319, %v2131
      %2164 = vst.msk [vmem:[%s278 + $0x48] sm:$0xff] %vm319, %v2132
      %2165 = vst.msk [vmem:[%s278 + $0x50] sm:$0xff] %vm319, %v2133
      %2166 = vst.msk [vmem:[%s278 + $0x58] sm:$0xff] %vm319, %v2134
      %2167 = vst.msk [vmem:[%s278 + $0x60] sm:$0xff] %vm319, %v2135
      %2168 = vst.msk [vmem:[%s278 + $0x68] sm:$0xff] %vm319, %v2136
      %2169 = vst.msk [vmem:[%s278 + $0x70] sm:$0xff] %vm319, %v2137
      %2170 = vst.msk [vmem:[%s278 + $0x78] sm:$0xff] %vm319, %v2138
      %2171 = vst.msk [vmem:[%s278 + $0x80] sm:$0xff] %vm319, %v2139
      %2172 = vst.msk [vmem:[%s278 + $0x88] sm:$0xff] %vm319, %v2140
      %2173 = vst.msk [vmem:[%s278 + $0x90] sm:$0xff] %vm319, %v2141
      %2174 = vst.msk [vmem:[%s278 + $0x98] sm:$0xff] %vm319, %v2142
      %2175 = vst.msk [vmem:[%s278 + $0xa0] sm:$0xff] %vm319, %v2143
      %2176 = vst.msk [vmem:[%s278 + $0xa8] sm:$0xff] %vm319, %v2144
      %2177 = vst.msk [vmem:[%s278 + $0xb0] sm:$0xff] %vm319, %v2145
      %2178 = vst.msk [vmem:[%s278 + $0xb8] sm:$0xff] %vm319, %v2146
      %2179 = vst.msk [vmem:[%s278 + $0xc0] sm:$0xff] %vm319, %v2147
      %2180 = vst.msk [vmem:[%s278 + $0xc8] sm:$0xff] %vm319, %v2148
      %2181 = vst.msk [vmem:[%s278 + $0xd0] sm:$0xff] %vm319, %v2149
      %2182 = vst.msk [vmem:[%s278 + $0xd8] sm:$0xff] %vm319, %v2150
      %2183 = vst.msk [vmem:[%s278 + $0xe0] sm:$0xff] %vm319, %v2151
      %2184 = vst.msk [vmem:[%s278 + $0xe8] sm:$0xff] %vm319, %v2152
      %2185 = vst.msk [vmem:[%s278 + $0xf0] sm:$0xff] %vm319, %v2153
      %2186 = vst.msk [vmem:[%s278 + $0xf8] sm:$0xff] %vm319, %v2154
      %p2187 = scmp.lt.s32.totalorder %s18, 1
      %s2188 = scalar_select %p2187, %s18, 1
      %s2189 = smul.addr %s2188, 32
      %s2190 = smul.addr %s2189, 8
      %s2191 = scalar_lea.vmem %s7, %s2190
      // Predicated region
      $region49: #{tpu_custom_call.1} parent=47 // pred_check
        %p2192 = pneg %p188
      $region50: #{tpu_custom_call.1} parent=47 // pred_check_branch
        %2194 = sbr.rel (%p2192) target = $region52
      $region51: #{tpu_custom_call.1} parent=47 // pred_region
        _
      $region52: #{tpu_custom_call.1} parent=47 // pred_fallthru
        _
    $region48: #{tpu_custom_call.1} parent=5 // pred_fallthru
      _
    %p2195 = scmp.le.s32.totalorder 2, %s13
    // Predicated region
    $region53: #{tpu_custom_call.1} parent=5 // pred_check
      %p2196 = pneg %p2195
    $region54: #{tpu_custom_call.1} parent=5 // pred_check_branch
      %2198 = sbr.rel (%p2196) target = $region56
    $region55: #{tpu_custom_call.1} parent=5 // pred_region
      %s2199 = ssub.s32 %s13, 2
      // Predicated region
      $region57: #{tpu_custom_call.1} parent=55 // pred_check
        %p2200 = pneg %p194
      $region58: #{tpu_custom_call.1} parent=55 // pred_check_branch
        %2202 = sbr.rel (%p2200) target = $region60
      $region59: #{tpu_custom_call.1} parent=55 // pred_region
        %p2203 = scmp.lt.s32.totalorder %s19, 1
        %s2204 = scalar_select %p2203, %s19, 1
        %s2205 = smul.addr %s2204, 32
        %s2206 = smul.addr %s2205, 8
        %s2207 = scalar_lea.vmem %s7, %s2206
      $region60: #{tpu_custom_call.1} parent=55 // pred_fallthru
        _
    $region56: #{tpu_custom_call.1} parent=5 // pred_fallthru
      _
  $region6: #{tpu_custom_call.1} parent=0 // loop_footer
    %s17 = sadd.s32 1, %s13
  $region7: #{tpu_custom_call.1} parent=0 // loop_footer_branch
    %12 = sbr.rel target = $region3
  $region8: #{tpu_custom_call.1} parent=0 // loop_exit
    _

</llo_original>
